<compile_context>
chip_gen: v5e
topology: v5e:2x2
jax: 0.10.0
libtpu: 0.0.40
codegen_flags: <defaults>
</compile_context>

<pallas_src>
import functools

import jax
import jax.numpy as jnp
from jax.experimental import pallas as pl
from jax.experimental.pallas import tpu as pltpu

_PAD = 128      # lane-dense feature padding
_MU_OFF = 64    # lane offset of the log_var half inside the packed fc_mu/fc_var slab


# --------------------------------------------------------------------------- #
# Fused Pallas kernel (whole network, one batch tile per grid step)
# --------------------------------------------------------------------------- #
def _apply_act(name, x):
    if name == "relu":
        return jnp.maximum(x, 0.0)
    if name == "tanh":
        return jnp.tanh(x)
    if name == "sigmoid":
        return jax.nn.sigmoid(x)
    return x  # identity


def _vae_fused_kernel(w_ref, x_ref, eps_ref, W_ref, s_ref,
                      wrow_enc_ref, wrow_dec_ref,
                      recon_ref, z_ref, mu_ref, logvar_ref,
                      *, acts, n_enc, n_dec, z_act, latent_dim):
    w = w_ref[0, 0]                                   # scalar conditioning weight (SMEM)
    tb = x_ref.shape[0]
    lane = jax.lax.broadcasted_iota(jnp.int32, (tb, _PAD), 1)

    def dense(h_bf16, li, extra=None):
        # bf16 x bf16 operands, f32 accumulation on the MXU.
        y = jnp.dot(h_bf16, W_ref[li], preferred_element_type=jnp.float32)
        if extra is not None:
            y = y + extra
        return y + s_ref[li]

    # ---------------- encoder:  h = act(h @ W' (+ w * w_row) + shift') -------
    h = x_ref[...]                                    # bf16 (tb, 128)
    li = 0
    for i in range(n_enc):
        extra = (w * wrow_enc_ref[...]) if i == 0 else None   # "+w" column, no concat
        h = _apply_act(acts[li], dense(h, li, extra)).astype(jnp.bfloat16)
        li += 1

    # ---- packed fc_mu / fc_var: one dot, split by lane-roll (XLU) + mask ----
    mv = dense(h, li)
    li += 1
    lo_half = lane < _MU_OFF
    mu = jnp.where(lo_half, mv, 0.0)
    logvar = jnp.where(lo_half, pltpu.roll(mv, shift=_MU_OFF, axis=1), 0.0)

    # ---- reparameterization:  z = z_act(eps * exp(0.5*logvar) + mu) ---------
    z = _apply_act(z_act, eps_ref[...] * jnp.exp(0.5 * logvar) + mu)
    z = jnp.where(lane < latent_dim, z, 0.0)          # keep padded lanes exactly 0

    # ---------------- decoder + final layer ----------------------------------
    d = z.astype(jnp.bfloat16)
    for i in range(n_dec):
        extra = (w * wrow_dec_ref[...]) if i == 0 else None
        d = _apply_act(acts[li], dense(d, li, extra)).astype(jnp.bfloat16)
        li += 1
    recon_ref[...] = _apply_act(acts[li], dense(d, li))

    z_ref[...] = z
    mu_ref[...] = mu
    logvar_ref[...] = logvar


# --------------------------------------------------------------------------- #
# Parameter construction (deterministic; mirrors the PyTorch __init__ shapes,
# with BN/bias folded into the weights, fc_mu/fc_var packed into one slab, and
# everything padded to 128 lanes; weights cast to bf16).
# --------------------------------------------------------------------------- #
def build_vae_params(key, *, channels, max_size, min_size, l_mult, latent_dim,
                     act, z_act, final_act, d_rate=0.0):
    del d_rate  # Dropout is identity in eval mode.
    in_channels = channels[0]
    size = max_size - min_size
    min_dim = 32
    hidden_dims = [int(in_channels - i * (in_channels - min_dim) / (size - 1))
                   for i in range(size)]
    assert latent_dim <= _MU_OFF, "packed fc_mu/fc_var requires latent_dim <= 64"
    # TODO(synk): fall back to two separate fc_mu/fc_var slabs for latent_dim > 64.

    keys = iter(jax.random.split(key, 128))

    def _linear(din, dout):
        k1, k2 = jax.random.split(next(keys))
        bound = 1.0 / float(din) ** 0.5
        W = jax.random.uniform(k1, (din, dout), jnp.float32, -bound, bound)
        b = jax.random.uniform(k2, (dout,), jnp.float32, -bound, bound)
        return W, b

    def _bn(d):
        k1, k2, k3 = jax.random.split(next(keys), 3)
        gamma = 1.0 + 0.1 * jax.random.normal(k1, (d,), jnp.float32)
        beta = 0.1 * jax.random.normal(k2, (d,), jnp.float32)
        running_mean = 0.1 * jax.random.normal(k3, (d,), jnp.float32)
        running_var = jnp.ones((d,), jnp.float32)
        eps = 1e-5
        scale = gamma / jnp.sqrt(running_var + eps)
        shift = beta - running_mean * scale
        return scale, shift

    def _fused(din, dout, activation, with_bn=True):
        # Linear -> (eval BatchNorm) folded into one affine:  x @ W' + shift'.
        W, b = _linear(din, dout)
        if with_bn:
            scale, shift = _bn(dout)
        else:
            scale = jnp.ones((dout,), jnp.float32)
            shift = jnp.zeros((dout,), jnp.float32)
        return W * scale[None, :], b * scale + shift, activation

    layers = []

    # ----- encoder -----
    Wf, sf, a = _fused(hidden_dims[0] + 1, hidden_dims[0], act)
    wrow_enc = Wf[-1]                 # BN-folded contribution of the "w" feature
    layers.append((Wf[:-1], sf, a))
    for _ in range(l_mult):
        layers.append(_fused(hidden_dims[0], hidden_dims[0], act))
    for i in range(len(hidden_dims) - 2):
        layers.append(_fused(hidden_dims[i], hidden_dims[i + 1], act))
    layers.append(_fused(hidden_dims[-2], hidden_dims[-1], z_act))
    n_enc = len(layers)

    # ----- packed fc_mu / fc_var (no BN, identity activation) -----
    Wmu, bmu = _linear(hidden_dims[-1], latent_dim)
    Wvar, bvar = _linear(hidden_dims[-1], latent_dim)
    W_mv = jnp.zeros((hidden_dims[-1], _PAD), jnp.float32)
    W_mv = W_mv.at[:, :latent_dim].set(Wmu).at[:, _MU_OFF:_MU_OFF + latent_dim].set(Wvar)
    s_mv = jnp.zeros((_PAD,), jnp.float32)
    s_mv = s_mv.at[:latent_dim].set(bmu).at[_MU_OFF:_MU_OFF + latent_dim].set(bvar)
    layers.append((W_mv, s_mv, "identity"))

    # ----- decoder -----
    hd = list(hidden_dims) + [latent_dim]
    hd.reverse()
    hd[0] = hd[0] + 1
    Wf, sf, a = _fused(hd[0], hd[1], act)
    wrow_dec = Wf[-1]
    dec_start = len(layers)
    layers.append((Wf[:-1], sf, a))
    for i in range(1, len(hd) - 1):
        layers.append(_fused(hd[i], hd[i + 1], act))
    for _ in range(l_mult):
        layers.append(_fused(hd[-1], hd[-1], act))
    n_dec = len(layers) - dec_start

    # ----- final layer -----
    layers.append(_fused(hd[-1], hd[-1], final_act))

    # ----- pad & stack to lane-dense (128) tiles; weights -> bf16 -----
    L = len(layers)
    W_stack = jnp.zeros((L, _PAD, _PAD), jnp.float32)
    s_stack = jnp.zeros((L, 1, _PAD), jnp.float32)
    acts = []
    for li, (Wl, sl, al) in enumerate(layers):
        din, dout = Wl.shape
        W_stack = W_stack.at[li, :din, :dout].set(Wl)
        s_stack = s_stack.at[li, 0, :dout].set(sl)
        acts.append(al)
    W_stack = W_stack.astype(jnp.bfloat16)

    wrow_enc_p = jnp.zeros((1, _PAD), jnp.float32).at[0, :wrow_enc.shape[0]].set(wrow_enc)
    wrow_dec_p = jnp.zeros((1, _PAD), jnp.float32).at[0, :wrow_dec.shape[0]].set(wrow_dec)

    return dict(
        W_stack=W_stack, shift_stack=s_stack,
        wrow_enc=wrow_enc_p, wrow_dec=wrow_dec_p,
        acts=tuple(acts), n_enc=n_enc, n_dec=n_dec,
        z_act=z_act, latent_dim=latent_dim, out_dim=hd[-1])


# --------------------------------------------------------------------------- #
# Forward pass (mirrors VariationalAutoEncoder.forward) — single pallas_call
# with a batch-tile grid.  VMEM footprint: ~0.4 MiB resident weights +
# ~2 * block_b * 128 * 22 B of double-buffered activation tiles (≈1.4 MiB at
# block_b=256), far below the scoped VMEM limit on every TPU generation.
# --------------------------------------------------------------------------- #
def vae_forward(params, x, w, eps, *, block_b=256):
    """Returns [reconstruction, z, mu, log_var] like the PyTorch forward."""
    B, din = x.shape
    # bf16 activations pack 16 sublanes per vreg -> pad batch to a multiple of 16.
    block_b = max(16, (min(block_b, B) + 15) // 16 * 16)
    Bp = (B + block_b - 1) // block_b * block_b
    ntiles = Bp // block_b

    x_p = jnp.zeros((Bp, _PAD), jnp.bfloat16).at[:B, :din].set(x.astype(jnp.bfloat16))
    eps_p = jnp.zeros((Bp, _PAD), jnp.float32).at[:B, :eps.shape[1]].set(eps)
    w_arr = jnp.full((1, 1), w, jnp.float32)

    kernel = functools.partial(
        _vae_fused_kernel,
        acts=params["acts"], n_enc=params["n_enc"], n_dec=params["n_dec"],
        z_act=params["z_act"], latent_dim=params["latent_dim"])

    L = params["W_stack"].shape[0]
    # Constant block index -> parameters stay VMEM-resident across batch tiles.
    const = lambda shape: pl.BlockSpec(shape, lambda b, _s=shape: (0,) * len(_s))
    act_spec = pl.BlockSpec((block_b, _PAD), lambda b: (b, 0))

    recon, z, mu, logvar = pl.pallas_call(
        kernel,
        grid=(ntiles,),
        out_shape=tuple(jax.ShapeDtypeStruct((Bp, _PAD), jnp.float32)
                        for _ in range(4)),
        in_specs=[
            pl.BlockSpec((1, 1), lambda b: (0, 0),
                         memory_space=pltpu.MemorySpace.SMEM),   # scalar w
            act_spec,                               # x tile (bf16)
            act_spec,                               # eps tile (f32)
            const((L, _PAD, _PAD)),                 # weights (bf16, resident)
            const((L, 1, _PAD)),                    # shifts (f32, resident)
            const((1, _PAD)),                       # wrow_enc
            const((1, _PAD)),                       # wrow_dec
        ],
        out_specs=(act_spec, act_spec, act_spec, act_spec),
        compiler_params=pltpu.CompilerParams(
            dimension_semantics=("parallel",)),     # v7x: 2 TCs split batch tiles
    )(w_arr, x_p, eps_p, params["W_stack"], params["shift_stack"],
      params["wrow_enc"], params["wrow_dec"])

    ld = params["latent_dim"]
    od = params["out_dim"]
    return [recon[:B, :od], z[:B, :ld], mu[:B, :ld], logvar[:B, :ld]]


# --------------------------------------------------------------------------- #
# Pure-JAX reference of the same eval-mode math (same bf16 weights, f32
# arithmetic throughout) — used only to sanity-check the kernel numerically.
# --------------------------------------------------------------------------- #
def vae_reference(params, x, w, eps):
    W = params["W_stack"].astype(jnp.float32)
    s = params["shift_stack"][:, 0, :]
    acts = params["acts"]
    n_enc, n_dec = params["n_enc"], params["n_dec"]
    ld, od = params["latent_dim"], params["out_dim"]
    B, din = x.shape

    h = jnp.zeros((B, _PAD), jnp.float32).at[:, :din].set(
        x.astype(jnp.bfloat16).astype(jnp.float32))
    e = jnp.zeros((B, _PAD), jnp.float32).at[:, :eps.shape[1]].set(eps)

    li = 0
    for i in range(n_enc):
        y = h @ W[li] + s[li]
        if i == 0:
            y = y + w * params["wrow_enc"]
        h = _apply_act(acts[li], y)
        li += 1
    mv = h @ W[li] + s[li]
    li += 1
    mu = jnp.zeros((B, _PAD), jnp.float32).at[:, :ld].set(mv[:, :ld])
    logvar = jnp.zeros((B, _PAD), jnp.float32).at[:, :ld].set(
        mv[:, _MU_OFF:_MU_OFF + ld])
    z = _apply_act(params["z_act"], e * jnp.exp(0.5 * logvar) + mu)
    z = z.at[:, ld:].set(0.0)
    d = z
    for i in range(n_dec):
        y = d @ W[li] + s[li]
        if i == 0:
            y = y + w * params["wrow_dec"]
        d = _apply_act(acts[li], y)
        li += 1
    recon = _apply_act(acts[li], d @ W[li] + s[li])
    return recon[:, :od], z[:, :ld], mu[:, :ld], logvar[:, :ld]


# --------------------------------------------------------------------------- #
if __name__ == "__main__":
    # Small, constructor-consistent configuration.
    cfg = dict(
        channels=[64, 64],        # in_channels = hidden_dims[0] = 64
        max_size=8, min_size=4,   # size = 4 -> hidden_dims = [64, 53, 42, 32]
        l_mult=1,
        latent_dim=16,
        act="relu", z_act="tanh", final_act="sigmoid",
        d_rate=0.1,               # Dropout: identity in eval mode
    )
    B = 64                        # tiled as 2 x 32-row batch tiles (exercises the grid)
    in_channels = cfg["channels"][0]
    latent_dim = cfg["latent_dim"]

    root = jax.random.PRNGKey(0)
    k_params, k_x, k_eps = jax.random.split(root, 3)

    params = build_vae_params(k_params, **cfg)
    x = jax.random.normal(k_x, (B, in_channels), jnp.float32)
    w = jnp.float32(0.7)                                          # scalar conditioning weight
    eps = jax.random.normal(k_eps, (B, latent_dim), jnp.float32)  # ~ randn_like(std)

    outs = vae_forward(params, x, w, eps, block_b=32)
    jax.block_until_ready(outs)
    recon, z, mu, log_var = outs

    # Shape / range checks.
    assert recon.shape == (B, in_channels)
    assert z.shape == (B, latent_dim)
    assert mu.shape == (B, latent_dim)
    assert log_var.shape == (B, latent_dim)
    assert all(bool(jnp.isfinite(a).all()) for a in (recon, z, mu, log_var))
    assert bool(jnp.all((recon >= 0.0) & (recon <= 1.0)))   # sigmoid final activation
    assert bool(jnp.all(jnp.abs(z) <= 1.0))                 # tanh z_act

    # Numerical check vs. the pure-JAX reference (bf16 weights, f32 math).
    r_recon, r_z, r_mu, r_lv = vae_reference(params, x, w, eps)
    for got, want in ((recon, r_recon), (z, r_z), (mu, r_mu), (log_var, r_lv)):
        err = float(jnp.max(jnp.abs(got - want)))
        assert err < 0.05, err

    print("KERNEL_OK")
</pallas_src>

<mosaic_0001>
module attributes {stable_mosaic.version = 11 : i64} {
  func.func @_vae_fused_kernel(%arg0: i32, %arg1: memref<1x1xf32, #tpu.memory_space<smem>>, %arg2: memref<32x128xbf16, #tpu.memory_space<vmem>>, %arg3: memref<32x128xf32, #tpu.memory_space<vmem>>, %arg4: memref<12x128x128xbf16, #tpu.memory_space<vmem>>, %arg5: memref<12x1x128xf32, #tpu.memory_space<vmem>>, %arg6: memref<1x128xf32, #tpu.memory_space<vmem>>, %arg7: memref<1x128xf32, #tpu.memory_space<vmem>>, %arg8: memref<32x128xf32, #tpu.memory_space<vmem>>, %arg9: memref<32x128xf32, #tpu.memory_space<vmem>>, %arg10: memref<32x128xf32, #tpu.memory_space<vmem>>, %arg11: memref<32x128xf32, #tpu.memory_space<vmem>>) attributes {dimension_semantics = [#tpu.dimension_semantics<parallel>], iteration_bounds = array<i64: 2>, scalar_prefetch = 0 : i64, scratch_operands = 0 : i64, tpu.core_type = #tpu.core_type<tc>, window_params = [{transform_indices = @transform_0, window_bounds = array<i64: 1, 1>}, {transform_indices = @transform_1, window_bounds = array<i64: 32, 128>}, {transform_indices = @transform_2, window_bounds = array<i64: 32, 128>}, {pipeline_mode = #tpu.pipeline_mode<synchronous>, transform_indices = @transform_3, window_bounds = array<i64: 12, 128, 128>}, {pipeline_mode = #tpu.pipeline_mode<synchronous>, transform_indices = @transform_4, window_bounds = array<i64: 12, 1, 128>}, {pipeline_mode = #tpu.pipeline_mode<synchronous>, transform_indices = @transform_5, window_bounds = array<i64: 1, 128>}, {pipeline_mode = #tpu.pipeline_mode<synchronous>, transform_indices = @transform_6, window_bounds = array<i64: 1, 128>}, {transform_indices = @transform_7, window_bounds = array<i64: 32, 128>}, {transform_indices = @transform_8, window_bounds = array<i64: 32, 128>}, {transform_indices = @transform_9, window_bounds = array<i64: 32, 128>}, {transform_indices = @transform_10, window_bounds = array<i64: 32, 128>}]} {
    %c0 = arith.constant 0 : index
    %c0_0 = arith.constant 0 : index
    %0 = memref.load %arg1[%c0, %c0_0] : memref<1x1xf32, #tpu.memory_space<smem>>
    %1 = tpu.iota {dimensions = array<i32: 1>} : vector<32x128xi32>
    %c0_1 = arith.constant 0 : index
    %c0_2 = arith.constant 0 : index
    %2 = vector.load %arg2[%c0_1, %c0_2] : memref<32x128xbf16, #tpu.memory_space<vmem>>, vector<32x128xbf16>
    %c0_3 = arith.constant 0 : index
    %c0_4 = arith.constant 0 : index
    %3 = vector.load %arg6[%c0_3, %c0_4] : memref<1x128xf32, #tpu.memory_space<vmem>>, vector<1x128xf32>
    %4 = vector.broadcast %0 : f32 to vector<1x128xf32>
    %5 = arith.mulf %4, %3 : vector<1x128xf32>
    %c0_5 = arith.constant 0 : index
    %c0_6 = arith.constant 0 : index
    %c0_7 = arith.constant 0 : index
    %6 = vector.load %arg4[%c0_5, %c0_6, %c0_7] : memref<12x128x128xbf16, #tpu.memory_space<vmem>>, vector<1x128x128xbf16>
    %7 = vector.shape_cast %6 : vector<1x128x128xbf16> to vector<128x128xbf16>
    %cst = arith.constant dense<0.000000e+00> : vector<32x128xf32>
    %8 = tpu.matmul %2, %7, %cst {dimension_numbers = #tpu.dot_dimension_numbers<[1], [0], [0], [1], [0, 0, 1, 1], [], []>} : vector<32x128xbf16>, vector<128x128xbf16>, vector<32x128xf32> -> vector<32x128xf32>
    %9 = vector.broadcast %5 : vector<1x128xf32> to vector<32x128xf32>
    %10 = arith.addf %8, %9 : vector<32x128xf32>
    %c0_8 = arith.constant 0 : index
    %c0_9 = arith.constant 0 : index
    %c0_10 = arith.constant 0 : index
    %11 = vector.load %arg5[%c0_8, %c0_9, %c0_10] : memref<12x1x128xf32, #tpu.memory_space<vmem>>, vector<1x1x128xf32>
    %12 = vector.shape_cast %11 : vector<1x1x128xf32> to vector<1x128xf32>
    %13 = vector.broadcast %12 : vector<1x128xf32> to vector<32x128xf32>
    %14 = arith.addf %10, %13 : vector<32x128xf32>
    %cst_11 = arith.constant 0.000000e+00 : f32
    %15 = vector.broadcast %cst_11 : f32 to vector<32x128xf32>
    %16 = arith.maximumf %14, %15 : vector<32x128xf32>
    %17 = arith.truncf %16 : vector<32x128xf32> to vector<32x128xbf16>
    %c1 = arith.constant 1 : index
    %c0_12 = arith.constant 0 : index
    %c0_13 = arith.constant 0 : index
    %18 = vector.load %arg4[%c1, %c0_12, %c0_13] : memref<12x128x128xbf16, #tpu.memory_space<vmem>>, vector<1x128x128xbf16>
    %19 = vector.shape_cast %18 : vector<1x128x128xbf16> to vector<128x128xbf16>
    %cst_14 = arith.constant dense<0.000000e+00> : vector<32x128xf32>
    %20 = tpu.matmul %17, %19, %cst_14 {dimension_numbers = #tpu.dot_dimension_numbers<[1], [0], [0], [1], [0, 0, 1, 1], [], []>} : vector<32x128xbf16>, vector<128x128xbf16>, vector<32x128xf32> -> vector<32x128xf32>
    %c1_15 = arith.constant 1 : index
    %c0_16 = arith.constant 0 : index
    %c0_17 = arith.constant 0 : index
    %21 = vector.load %arg5[%c1_15, %c0_16, %c0_17] : memref<12x1x128xf32, #tpu.memory_space<vmem>>, vector<1x1x128xf32>
    %22 = vector.shape_cast %21 : vector<1x1x128xf32> to vector<1x128xf32>
    %23 = vector.broadcast %22 : vector<1x128xf32> to vector<32x128xf32>
    %24 = arith.addf %20, %23 : vector<32x128xf32>
    %cst_18 = arith.constant 0.000000e+00 : f32
    %25 = vector.broadcast %cst_18 : f32 to vector<32x128xf32>
    %26 = arith.maximumf %24, %25 : vector<32x128xf32>
    %27 = arith.truncf %26 : vector<32x128xf32> to vector<32x128xbf16>
    %c2 = arith.constant 2 : index
    %c0_19 = arith.constant 0 : index
    %c0_20 = arith.constant 0 : index
    %28 = vector.load %arg4[%c2, %c0_19, %c0_20] : memref<12x128x128xbf16, #tpu.memory_space<vmem>>, vector<1x128x128xbf16>
    %29 = vector.shape_cast %28 : vector<1x128x128xbf16> to vector<128x128xbf16>
    %cst_21 = arith.constant dense<0.000000e+00> : vector<32x128xf32>
    %30 = tpu.matmul %27, %29, %cst_21 {dimension_numbers = #tpu.dot_dimension_numbers<[1], [0], [0], [1], [0, 0, 1, 1], [], []>} : vector<32x128xbf16>, vector<128x128xbf16>, vector<32x128xf32> -> vector<32x128xf32>
    %c2_22 = arith.constant 2 : index
    %c0_23 = arith.constant 0 : index
    %c0_24 = arith.constant 0 : index
    %31 = vector.load %arg5[%c2_22, %c0_23, %c0_24] : memref<12x1x128xf32, #tpu.memory_space<vmem>>, vector<1x1x128xf32>
    %32 = vector.shape_cast %31 : vector<1x1x128xf32> to vector<1x128xf32>
    %33 = vector.broadcast %32 : vector<1x128xf32> to vector<32x128xf32>
    %34 = arith.addf %30, %33 : vector<32x128xf32>
    %cst_25 = arith.constant 0.000000e+00 : f32
    %35 = vector.broadcast %cst_25 : f32 to vector<32x128xf32>
    %36 = arith.maximumf %34, %35 : vector<32x128xf32>
    %37 = arith.truncf %36 : vector<32x128xf32> to vector<32x128xbf16>
    %c3 = arith.constant 3 : index
    %c0_26 = arith.constant 0 : index
    %c0_27 = arith.constant 0 : index
    %38 = vector.load %arg4[%c3, %c0_26, %c0_27] : memref<12x128x128xbf16, #tpu.memory_space<vmem>>, vector<1x128x128xbf16>
    %39 = vector.shape_cast %38 : vector<1x128x128xbf16> to vector<128x128xbf16>
    %cst_28 = arith.constant dense<0.000000e+00> : vector<32x128xf32>
    %40 = tpu.matmul %37, %39, %cst_28 {dimension_numbers = #tpu.dot_dimension_numbers<[1], [0], [0], [1], [0, 0, 1, 1], [], []>} : vector<32x128xbf16>, vector<128x128xbf16>, vector<32x128xf32> -> vector<32x128xf32>
    %c3_29 = arith.constant 3 : index
    %c0_30 = arith.constant 0 : index
    %c0_31 = arith.constant 0 : index
    %41 = vector.load %arg5[%c3_29, %c0_30, %c0_31] : memref<12x1x128xf32, #tpu.memory_space<vmem>>, vector<1x1x128xf32>
    %42 = vector.shape_cast %41 : vector<1x1x128xf32> to vector<1x128xf32>
    %43 = vector.broadcast %42 : vector<1x128xf32> to vector<32x128xf32>
    %44 = arith.addf %40, %43 : vector<32x128xf32>
    %cst_32 = arith.constant 0.000000e+00 : f32
    %45 = vector.broadcast %cst_32 : f32 to vector<32x128xf32>
    %46 = arith.maximumf %44, %45 : vector<32x128xf32>
    %47 = arith.truncf %46 : vector<32x128xf32> to vector<32x128xbf16>
    %c4 = arith.constant 4 : index
    %c0_33 = arith.constant 0 : index
    %c0_34 = arith.constant 0 : index
    %48 = vector.load %arg4[%c4, %c0_33, %c0_34] : memref<12x128x128xbf16, #tpu.memory_space<vmem>>, vector<1x128x128xbf16>
    %49 = vector.shape_cast %48 : vector<1x128x128xbf16> to vector<128x128xbf16>
    %cst_35 = arith.constant dense<0.000000e+00> : vector<32x128xf32>
    %50 = tpu.matmul %47, %49, %cst_35 {dimension_numbers = #tpu.dot_dimension_numbers<[1], [0], [0], [1], [0, 0, 1, 1], [], []>} : vector<32x128xbf16>, vector<128x128xbf16>, vector<32x128xf32> -> vector<32x128xf32>
    %c4_36 = arith.constant 4 : index
    %c0_37 = arith.constant 0 : index
    %c0_38 = arith.constant 0 : index
    %51 = vector.load %arg5[%c4_36, %c0_37, %c0_38] : memref<12x1x128xf32, #tpu.memory_space<vmem>>, vector<1x1x128xf32>
    %52 = vector.shape_cast %51 : vector<1x1x128xf32> to vector<1x128xf32>
    %53 = vector.broadcast %52 : vector<1x128xf32> to vector<32x128xf32>
    %54 = arith.addf %50, %53 : vector<32x128xf32>
    %55 = math.tanh %54 : vector<32x128xf32>
    %56 = arith.truncf %55 : vector<32x128xf32> to vector<32x128xbf16>
    %c5 = arith.constant 5 : index
    %c0_39 = arith.constant 0 : index
    %c0_40 = arith.constant 0 : index
    %57 = vector.load %arg4[%c5, %c0_39, %c0_40] : memref<12x128x128xbf16, #tpu.memory_space<vmem>>, vector<1x128x128xbf16>
    %58 = vector.shape_cast %57 : vector<1x128x128xbf16> to vector<128x128xbf16>
    %cst_41 = arith.constant dense<0.000000e+00> : vector<32x128xf32>
    %59 = tpu.matmul %56, %58, %cst_41 {dimension_numbers = #tpu.dot_dimension_numbers<[1], [0], [0], [1], [0, 0, 1, 1], [], []>} : vector<32x128xbf16>, vector<128x128xbf16>, vector<32x128xf32> -> vector<32x128xf32>
    %c5_42 = arith.constant 5 : index
    %c0_43 = arith.constant 0 : index
    %c0_44 = arith.constant 0 : index
    %60 = vector.load %arg5[%c5_42, %c0_43, %c0_44] : memref<12x1x128xf32, #tpu.memory_space<vmem>>, vector<1x1x128xf32>
    %61 = vector.shape_cast %60 : vector<1x1x128xf32> to vector<1x128xf32>
    %62 = vector.broadcast %61 : vector<1x128xf32> to vector<32x128xf32>
    %63 = arith.addf %59, %62 : vector<32x128xf32>
    %c64_i32 = arith.constant 64 : i32
    %64 = vector.broadcast %c64_i32 : i32 to vector<32x128xi32>
    %65 = arith.cmpi slt, %1, %64 : vector<32x128xi32>
    %cst_45 = arith.constant 0.000000e+00 : f32
    %66 = vector.broadcast %cst_45 : f32 to vector<32x128xf32>
    %67 = arith.select %65, %63, %66 : vector<32x128xi1>, vector<32x128xf32>
    %c64_i32_46 = arith.constant 64 : i32
    %68 = tpu.dynamic_rotate %63 by %c64_i32_46 dim 1 : vector<32x128xf32>, i32 -> vector<32x128xf32>
    %cst_47 = arith.constant 0.000000e+00 : f32
    %69 = vector.broadcast %cst_47 : f32 to vector<32x128xf32>
    %70 = arith.select %65, %68, %69 : vector<32x128xi1>, vector<32x128xf32>
    %c0_48 = arith.constant 0 : index
    %c0_49 = arith.constant 0 : index
    %71 = vector.load %arg3[%c0_48, %c0_49] : memref<32x128xf32, #tpu.memory_space<vmem>>, vector<32x128xf32>
    %cst_50 = arith.constant 5.000000e-01 : f32
    %72 = vector.broadcast %cst_50 : f32 to vector<32x128xf32>
    %73 = arith.mulf %72, %70 : vector<32x128xf32>
    %74 = math.exp %73 : vector<32x128xf32>
    %75 = arith.mulf %71, %74 : vector<32x128xf32>
    %76 = arith.addf %75, %67 : vector<32x128xf32>
    %77 = math.tanh %76 : vector<32x128xf32>
    %c16_i32 = arith.constant 16 : i32
    %78 = vector.broadcast %c16_i32 : i32 to vector<32x128xi32>
    %79 = arith.cmpi slt, %1, %78 : vector<32x128xi32>
    %cst_51 = arith.constant 0.000000e+00 : f32
    %80 = vector.broadcast %cst_51 : f32 to vector<32x128xf32>
    %81 = arith.select %79, %77, %80 : vector<32x128xi1>, vector<32x128xf32>
    %82 = arith.truncf %81 : vector<32x128xf32> to vector<32x128xbf16>
    %c0_52 = arith.constant 0 : index
    %c0_53 = arith.constant 0 : index
    %83 = vector.load %arg7[%c0_52, %c0_53] : memref<1x128xf32, #tpu.memory_space<vmem>>, vector<1x128xf32>
    %84 = vector.broadcast %0 : f32 to vector<1x128xf32>
    %85 = arith.mulf %84, %83 : vector<1x128xf32>
    %c6 = arith.constant 6 : index
    %c0_54 = arith.constant 0 : index
    %c0_55 = arith.constant 0 : index
    %86 = vector.load %arg4[%c6, %c0_54, %c0_55] : memref<12x128x128xbf16, #tpu.memory_space<vmem>>, vector<1x128x128xbf16>
    %87 = vector.shape_cast %86 : vector<1x128x128xbf16> to vector<128x128xbf16>
    %cst_56 = arith.constant dense<0.000000e+00> : vector<32x128xf32>
    %88 = tpu.matmul %82, %87, %cst_56 {dimension_numbers = #tpu.dot_dimension_numbers<[1], [0], [0], [1], [0, 0, 1, 1], [], []>} : vector<32x128xbf16>, vector<128x128xbf16>, vector<32x128xf32> -> vector<32x128xf32>
    %89 = vector.broadcast %85 : vector<1x128xf32> to vector<32x128xf32>
    %90 = arith.addf %88, %89 : vector<32x128xf32>
    %c6_57 = arith.constant 6 : index
    %c0_58 = arith.constant 0 : index
    %c0_59 = arith.constant 0 : index
    %91 = vector.load %arg5[%c6_57, %c0_58, %c0_59] : memref<12x1x128xf32, #tpu.memory_space<vmem>>, vector<1x1x128xf32>
    %92 = vector.shape_cast %91 : vector<1x1x128xf32> to vector<1x128xf32>
    %93 = vector.broadcast %92 : vector<1x128xf32> to vector<32x128xf32>
    %94 = arith.addf %90, %93 : vector<32x128xf32>
    %cst_60 = arith.constant 0.000000e+00 : f32
    %95 = vector.broadcast %cst_60 : f32 to vector<32x128xf32>
    %96 = arith.maximumf %94, %95 : vector<32x128xf32>
    %97 = arith.truncf %96 : vector<32x128xf32> to vector<32x128xbf16>
    %c7 = arith.constant 7 : index
    %c0_61 = arith.constant 0 : index
    %c0_62 = arith.constant 0 : index
    %98 = vector.load %arg4[%c7, %c0_61, %c0_62] : memref<12x128x128xbf16, #tpu.memory_space<vmem>>, vector<1x128x128xbf16>
    %99 = vector.shape_cast %98 : vector<1x128x128xbf16> to vector<128x128xbf16>
    %cst_63 = arith.constant dense<0.000000e+00> : vector<32x128xf32>
    %100 = tpu.matmul %97, %99, %cst_63 {dimension_numbers = #tpu.dot_dimension_numbers<[1], [0], [0], [1], [0, 0, 1, 1], [], []>} : vector<32x128xbf16>, vector<128x128xbf16>, vector<32x128xf32> -> vector<32x128xf32>
    %c7_64 = arith.constant 7 : index
    %c0_65 = arith.constant 0 : index
    %c0_66 = arith.constant 0 : index
    %101 = vector.load %arg5[%c7_64, %c0_65, %c0_66] : memref<12x1x128xf32, #tpu.memory_space<vmem>>, vector<1x1x128xf32>
    %102 = vector.shape_cast %101 : vector<1x1x128xf32> to vector<1x128xf32>
    %103 = vector.broadcast %102 : vector<1x128xf32> to vector<32x128xf32>
    %104 = arith.addf %100, %103 : vector<32x128xf32>
    %cst_67 = arith.constant 0.000000e+00 : f32
    %105 = vector.broadcast %cst_67 : f32 to vector<32x128xf32>
    %106 = arith.maximumf %104, %105 : vector<32x128xf32>
    %107 = arith.truncf %106 : vector<32x128xf32> to vector<32x128xbf16>
    %c8 = arith.constant 8 : index
    %c0_68 = arith.constant 0 : index
    %c0_69 = arith.constant 0 : index
    %108 = vector.load %arg4[%c8, %c0_68, %c0_69] : memref<12x128x128xbf16, #tpu.memory_space<vmem>>, vector<1x128x128xbf16>
    %109 = vector.shape_cast %108 : vector<1x128x128xbf16> to vector<128x128xbf16>
    %cst_70 = arith.constant dense<0.000000e+00> : vector<32x128xf32>
    %110 = tpu.matmul %107, %109, %cst_70 {dimension_numbers = #tpu.dot_dimension_numbers<[1], [0], [0], [1], [0, 0, 1, 1], [], []>} : vector<32x128xbf16>, vector<128x128xbf16>, vector<32x128xf32> -> vector<32x128xf32>
    %c8_71 = arith.constant 8 : index
    %c0_72 = arith.constant 0 : index
    %c0_73 = arith.constant 0 : index
    %111 = vector.load %arg5[%c8_71, %c0_72, %c0_73] : memref<12x1x128xf32, #tpu.memory_space<vmem>>, vector<1x1x128xf32>
    %112 = vector.shape_cast %111 : vector<1x1x128xf32> to vector<1x128xf32>
    %113 = vector.broadcast %112 : vector<1x128xf32> to vector<32x128xf32>
    %114 = arith.addf %110, %113 : vector<32x128xf32>
    %cst_74 = arith.constant 0.000000e+00 : f32
    %115 = vector.broadcast %cst_74 : f32 to vector<32x128xf32>
    %116 = arith.maximumf %114, %115 : vector<32x128xf32>
    %117 = arith.truncf %116 : vector<32x128xf32> to vector<32x128xbf16>
    %c9 = arith.constant 9 : index
    %c0_75 = arith.constant 0 : index
    %c0_76 = arith.constant 0 : index
    %118 = vector.load %arg4[%c9, %c0_75, %c0_76] : memref<12x128x128xbf16, #tpu.memory_space<vmem>>, vector<1x128x128xbf16>
    %119 = vector.shape_cast %118 : vector<1x128x128xbf16> to vector<128x128xbf16>
    %cst_77 = arith.constant dense<0.000000e+00> : vector<32x128xf32>
    %120 = tpu.matmul %117, %119, %cst_77 {dimension_numbers = #tpu.dot_dimension_numbers<[1], [0], [0], [1], [0, 0, 1, 1], [], []>} : vector<32x128xbf16>, vector<128x128xbf16>, vector<32x128xf32> -> vector<32x128xf32>
    %c9_78 = arith.constant 9 : index
    %c0_79 = arith.constant 0 : index
    %c0_80 = arith.constant 0 : index
    %121 = vector.load %arg5[%c9_78, %c0_79, %c0_80] : memref<12x1x128xf32, #tpu.memory_space<vmem>>, vector<1x1x128xf32>
    %122 = vector.shape_cast %121 : vector<1x1x128xf32> to vector<1x128xf32>
    %123 = vector.broadcast %122 : vector<1x128xf32> to vector<32x128xf32>
    %124 = arith.addf %120, %123 : vector<32x128xf32>
    %cst_81 = arith.constant 0.000000e+00 : f32
    %125 = vector.broadcast %cst_81 : f32 to vector<32x128xf32>
    %126 = arith.maximumf %124, %125 : vector<32x128xf32>
    %127 = arith.truncf %126 : vector<32x128xf32> to vector<32x128xbf16>
    %c10 = arith.constant 10 : index
    %c0_82 = arith.constant 0 : index
    %c0_83 = arith.constant 0 : index
    %128 = vector.load %arg4[%c10, %c0_82, %c0_83] : memref<12x128x128xbf16, #tpu.memory_space<vmem>>, vector<1x128x128xbf16>
    %129 = vector.shape_cast %128 : vector<1x128x128xbf16> to vector<128x128xbf16>
    %cst_84 = arith.constant dense<0.000000e+00> : vector<32x128xf32>
    %130 = tpu.matmul %127, %129, %cst_84 {dimension_numbers = #tpu.dot_dimension_numbers<[1], [0], [0], [1], [0, 0, 1, 1], [], []>} : vector<32x128xbf16>, vector<128x128xbf16>, vector<32x128xf32> -> vector<32x128xf32>
    %c10_85 = arith.constant 10 : index
    %c0_86 = arith.constant 0 : index
    %c0_87 = arith.constant 0 : index
    %131 = vector.load %arg5[%c10_85, %c0_86, %c0_87] : memref<12x1x128xf32, #tpu.memory_space<vmem>>, vector<1x1x128xf32>
    %132 = vector.shape_cast %131 : vector<1x1x128xf32> to vector<1x128xf32>
    %133 = vector.broadcast %132 : vector<1x128xf32> to vector<32x128xf32>
    %134 = arith.addf %130, %133 : vector<32x128xf32>
    %cst_88 = arith.constant 0.000000e+00 : f32
    %135 = vector.broadcast %cst_88 : f32 to vector<32x128xf32>
    %136 = arith.maximumf %134, %135 : vector<32x128xf32>
    %137 = arith.truncf %136 : vector<32x128xf32> to vector<32x128xbf16>
    %c11 = arith.constant 11 : index
    %c0_89 = arith.constant 0 : index
    %c0_90 = arith.constant 0 : index
    %138 = vector.load %arg4[%c11, %c0_89, %c0_90] : memref<12x128x128xbf16, #tpu.memory_space<vmem>>, vector<1x128x128xbf16>
    %139 = vector.shape_cast %138 : vector<1x128x128xbf16> to vector<128x128xbf16>
    %cst_91 = arith.constant dense<0.000000e+00> : vector<32x128xf32>
    %140 = tpu.matmul %137, %139, %cst_91 {dimension_numbers = #tpu.dot_dimension_numbers<[1], [0], [0], [1], [0, 0, 1, 1], [], []>} : vector<32x128xbf16>, vector<128x128xbf16>, vector<32x128xf32> -> vector<32x128xf32>
    %c11_92 = arith.constant 11 : index
    %c0_93 = arith.constant 0 : index
    %c0_94 = arith.constant 0 : index
    %141 = vector.load %arg5[%c11_92, %c0_93, %c0_94] : memref<12x1x128xf32, #tpu.memory_space<vmem>>, vector<1x1x128xf32>
    %142 = vector.shape_cast %141 : vector<1x1x128xf32> to vector<1x128xf32>
    %143 = vector.broadcast %142 : vector<1x128xf32> to vector<32x128xf32>
    %144 = arith.addf %140, %143 : vector<32x128xf32>
    %145 = arith.negf %144 : vector<32x128xf32>
    %146 = math.exp %145 : vector<32x128xf32>
    %cst_95 = arith.constant 1.000000e+00 : f32
    %147 = vector.broadcast %cst_95 : f32 to vector<32x128xf32>
    %148 = arith.addf %147, %146 : vector<32x128xf32>
    %149 = arith.divf %147, %148 : vector<32x128xf32>
    %c0_96 = arith.constant 0 : index
    %c0_97 = arith.constant 0 : index
    %150 = vector.load %arg8[%c0_96, %c0_97] : memref<32x128xf32, #tpu.memory_space<vmem>>, vector<32x128xf32>
    tpu.vector_store %arg8[%c0_96, %c0_97], %149 {strides = array<i32>} : memref<32x128xf32, #tpu.memory_space<vmem>>, vector<32x128xf32>,
    %c0_98 = arith.constant 0 : index
    %c0_99 = arith.constant 0 : index
    %151 = vector.load %arg9[%c0_98, %c0_99] : memref<32x128xf32, #tpu.memory_space<vmem>>, vector<32x128xf32>
    tpu.vector_store %arg9[%c0_98, %c0_99], %81 {strides = array<i32>} : memref<32x128xf32, #tpu.memory_space<vmem>>, vector<32x128xf32>,
    %c0_100 = arith.constant 0 : index
    %c0_101 = arith.constant 0 : index
    %152 = vector.load %arg10[%c0_100, %c0_101] : memref<32x128xf32, #tpu.memory_space<vmem>>, vector<32x128xf32>
    tpu.vector_store %arg10[%c0_100, %c0_101], %67 {strides = array<i32>} : memref<32x128xf32, #tpu.memory_space<vmem>>, vector<32x128xf32>,
    %c0_102 = arith.constant 0 : index
    %c0_103 = arith.constant 0 : index
    %153 = vector.load %arg11[%c0_102, %c0_103] : memref<32x128xf32, #tpu.memory_space<vmem>>, vector<32x128xf32>
    tpu.vector_store %arg11[%c0_102, %c0_103], %70 {strides = array<i32>} : memref<32x128xf32, #tpu.memory_space<vmem>>, vector<32x128xf32>,
    return
  }
  func.func @transform_0(%arg0: i32) -> (i32, i32) {
    %c0_i32 = arith.constant 0 : i32
    %c0_i32_0 = arith.constant 0 : i32
    %c0_i32_1 = arith.constant 0 : i32
    return %c0_i32, %c0_i32_0 : i32, i32
  }
  func.func @transform_1(%arg0: i32) -> (i32, i32) {
    %c0_i32 = arith.constant 0 : i32
    %c0_i32_0 = arith.constant 0 : i32
    return %arg0, %c0_i32 : i32, i32
  }
  func.func @transform_2(%arg0: i32) -> (i32, i32) {
    %c0_i32 = arith.constant 0 : i32
    %c0_i32_0 = arith.constant 0 : i32
    return %arg0, %c0_i32 : i32, i32
  }
  func.func @transform_3(%arg0: i32) -> (i32, i32, i32) {
    %c0_i32 = arith.constant 0 : i32
    %c0_i32_0 = arith.constant 0 : i32
    %c0_i32_1 = arith.constant 0 : i32
    %c0_i32_2 = arith.constant 0 : i32
    return %c0_i32, %c0_i32_0, %c0_i32_1 : i32, i32, i32
  }
  func.func @transform_4(%arg0: i32) -> (i32, i32, i32) {
    %c0_i32 = arith.constant 0 : i32
    %c0_i32_0 = arith.constant 0 : i32
    %c0_i32_1 = arith.constant 0 : i32
    %c0_i32_2 = arith.constant 0 : i32
    return %c0_i32, %c0_i32_0, %c0_i32_1 : i32, i32, i32
  }
  func.func @transform_5(%arg0: i32) -> (i32, i32) {
    %c0_i32 = arith.constant 0 : i32
    %c0_i32_0 = arith.constant 0 : i32
    %c0_i32_1 = arith.constant 0 : i32
    return %c0_i32, %c0_i32_0 : i32, i32
  }
  func.func @transform_6(%arg0: i32) -> (i32, i32) {
    %c0_i32 = arith.constant 0 : i32
    %c0_i32_0 = arith.constant 0 : i32
    %c0_i32_1 = arith.constant 0 : i32
    return %c0_i32, %c0_i32_0 : i32, i32
  }
  func.func @transform_7(%arg0: i32) -> (i32, i32) {
    %c0_i32 = arith.constant 0 : i32
    %c0_i32_0 = arith.constant 0 : i32
    return %arg0, %c0_i32 : i32, i32
  }
  func.func @transform_8(%arg0: i32) -> (i32, i32) {
    %c0_i32 = arith.constant 0 : i32
    %c0_i32_0 = arith.constant 0 : i32
    return %arg0, %c0_i32 : i32, i32
  }
  func.func @transform_9(%arg0: i32) -> (i32, i32) {
    %c0_i32 = arith.constant 0 : i32
    %c0_i32_0 = arith.constant 0 : i32
    return %arg0, %c0_i32 : i32, i32
  }
  func.func @transform_10(%arg0: i32) -> (i32, i32) {
    %c0_i32 = arith.constant 0 : i32
    %c0_i32_0 = arith.constant 0 : i32
    return %arg0, %c0_i32 : i32, i32
  }
}

</mosaic_0001>

<llo_original>
// kernel: tpu_custom_call.1
$region0: #{tpu_custom_call.1}
  #allocation0 [shape = 'u32[]', space=smem, size = 0x4, offset = 0x4, fixed_abs, tag = 'smem constant byte address 0x4 - core index']
  #allocation1 [shape = 'u32[72,128]{1,0:T(1,128)}', space=vmem, size = 0x9000, scoped, tag = 'internal scratch']
  #allocation2 [shape = 'f32[1,1]{1,0:T(1,128)S(6)}', space=smem, size = 0x200, scoped, tag = 'scoped memory for tpu_custom_call.1']
  %s0 = inlined_call_operand.<no memory space> [shape: f32[1,1], index: 0, kind: input, shape index: {}]
  %s1 = inlined_call_operand.hbm [shape: bf16[64,128], index: 1, kind: input, shape index: {}]
  %s2 = inlined_call_operand.hbm [shape: f32[64,128], index: 2, kind: input, shape index: {}]
  %s3 = inlined_call_operand.hbm [shape: bf16[12,128,128], index: 3, kind: input, shape index: {}]
  %s4 = inlined_call_operand.hbm [shape: f32[12,1,128], index: 4, kind: input, shape index: {}]
  %s5 = inlined_call_operand.vmem [shape: f32[1,128], index: 5, kind: input, shape index: {}]
  %s6 = inlined_call_operand.vmem [shape: f32[1,128], index: 6, kind: input, shape index: {}]
  %s7 = inlined_call_operand.hbm [shape: f32[64,128], index: 7, kind: output, shape index: {0}]
  %s8 = inlined_call_operand.hbm [shape: f32[64,128], index: 8, kind: output, shape index: {1}]
  %s9 = inlined_call_operand.hbm [shape: f32[64,128], index: 9, kind: output, shape index: {2}]
  %s10 = inlined_call_operand.hbm [shape: f32[64,128], index: 10, kind: output, shape index: {3}]
  %11 = xla_tuple %s7, %s8, %s9, %s10
  %s12 = sld [smem:[#allocation0]]
  $region101: #{tpu_custom_call.1} parent=0
    _
  %s14 = ssub.s32 1, %s12
  %s15 = scalar_select 0, %s14, %s12
  %16 = sst [smem:[#allocation2]] %s0
  $region1: #{tpu_custom_call.1} parent=0
    #allocation3 [shape = 'u8[16384]{0}', space=vmem, size = 0x4000, scoped, tag = 'input window, operand 1']
    #allocation4 [shape = 's32[2]{0}', space=sflag, size = 0x8, scoped, tag = 'scoped memory for tpu_custom_call.1']
    #allocation5 [shape = 's32[2]{0}', space=sflag, size = 0x8, scoped, tag = 'scoped memory for tpu_custom_call.1']
    #allocation6 [shape = 'u8[32768]{0}', space=vmem, size = 0x8000, scoped, tag = 'input window, operand 2']
    #allocation7 [shape = 's32[2]{0}', space=sflag, size = 0x8, scoped, tag = 'scoped memory for tpu_custom_call.1']
    #allocation8 [shape = 'u8[393216]{0}', space=vmem, size = 0x60000, scoped, tag = 'input window, operand 3, single buffered']
    #allocation9 [shape = 'u8[6144]{0}', space=vmem, size = 0x1800, scoped, tag = 'input window, operand 4, single buffered']
    #allocation10 [shape = 's32[1]{0}', space=sflag, size = 0x4, scoped, tag = 'scoped memory for tpu_custom_call.1']
    #allocation11 [shape = 'u8[32768]{0}', space=vmem, size = 0x8000, scoped, tag = 'output window, operand 0']
    #allocation12 [shape = 'u8[32768]{0}', space=vmem, size = 0x8000, scoped, tag = 'output window, operand 1']
    #allocation13 [shape = 's32[2]{0}', space=sflag, size = 0x8, scoped, tag = 'scoped memory for tpu_custom_call.1']
    #allocation14 [shape = 'u8[32768]{0}', space=vmem, size = 0x8000, scoped, tag = 'output window, operand 2']
    #allocation15 [shape = 'u8[32768]{0}', space=vmem, size = 0x8000, scoped, tag = 'output window, operand 3']
    #allocation16 [shape = 's32[2]{0}', space=sflag, size = 0x8, scoped, tag = 'scoped memory for tpu_custom_call.1']
    %17 = vsyncpa [#allocation4], 0
    %s18 = scalar_lea.sflag [#allocation4], 1
    %19 = vsyncpa %s18, 0
    %20 = vsyncpa [#allocation7], 0
    %s21 = scalar_lea.sflag [#allocation7], 1
    %22 = vsyncpa %s21, 0
    %23 = vsyncpa [#allocation10], 0
    %24 = vsyncpa [#allocation5], 0
    %s25 = scalar_lea.sflag [#allocation5], 1
    %26 = vsyncpa %s25, 0
    %27 = vsyncpa [#allocation13], 0
    %s28 = scalar_lea.sflag [#allocation13], 1
    %29 = vsyncpa %s28, 0
    %30 = vsyncpa [#allocation16], 0
    %s31 = scalar_lea.sflag [#allocation16], 1
    %32 = vsyncpa %s31, 0
    loop: start=0, step=1, limit=4
    $region2: #{tpu_custom_call.1} parent=1 // loop_pre_header
      _
    $region3: #{tpu_custom_call.1} parent=1 // loop_header
      %s34 = sphi 0, %s38
      %p35 = scmp.ge.s32.totalorder %s34, 4
      %s42 = sphi 0, %s42
      %s44 = sphi 0, %s42
      %s45 = sphi 0, %s44
      %s59 = sphi 0, %s45
      %s65 = sphi 0, %s67
      %s68 = sphi 0, %s65
      %s69 = sphi 0, %s68
      %s85 = sphi 0, %s69
      %s91 = sphi 0, %s93
      %s94 = sphi 0, %s91
      %s95 = sphi 0, %s94
      %s111 = sphi 0, %s95
      %s115 = sphi 0, %s115
      %s117 = sphi 0, %s115
      %s118 = sphi 0, %s117
      %s132 = sphi 0, %s118
      %s136 = sphi 0, %s136
      %s138 = sphi 0, %s136
      %s139 = sphi 0, %s138
      %s153 = sphi 0, %s139
      %s157 = sphi 0, %s157
      %s159 = sphi 0, %s157
      %s160 = sphi 0, %s159
      %s174 = sphi 0, %s160
      %s178 = sphi 0, %s178
      %s180 = sphi 0, %s178
      %s181 = sphi 0, %s180
      %s195 = sphi 0, %s181
      %s201 = sphi 0, %s203
      %s204 = sphi 0, %s201
      %s205 = sphi 0, %s204
      %s221 = sphi 0, %s205
      %s227 = sphi 0, %s229
      %s230 = sphi 0, %s227
      %s231 = sphi 0, %s230
      %s247 = sphi 0, %s231
      %s253 = sphi 0, %s255
      %s256 = sphi 0, %s253
      %s257 = sphi 0, %s256
      %s273 = sphi 0, %s257
      %s279 = sphi 0, %s281
      %s282 = sphi 0, %s279
      %s283 = sphi 0, %s282
      %s299 = sphi 0, %s283
    $region4: #{tpu_custom_call.1} parent=1 // loop_header_branch
      %37 = sbr.rel (%p35) target = $region8
    $region5: #{tpu_custom_call.1} parent=1 // loop_body
      %s39 = ssub.s32 %s34, 1
      %s40 = ssub.s32 %s34, 2
      %s41 = sadd.s32 %s34, 1
      %s43 = sadd.s32 %s42, 1
      %p46 = scmp.eq.s32.totalorder %s34, 1
      %p47 = scmp.ne.s32.totalorder %s42, %s44
      %p48 = scmp.eq.s32.totalorder %s34, 0
      %p49 = por %p47, %p48
      %p50 = scmp.ne.s32.totalorder %s42, %s44
      %p51 = scmp.eq.s32.totalorder %s39, 1
      %p52 = por %p50, %p51
      %p53 = scmp.ne.s32.totalorder %s44, %s45
      %p54 = scmp.eq.s32.totalorder %s39, 0
      %p55 = por %p53, %p54
      %p56 = scmp.ne.s32.totalorder %s44, %s45
      %p57 = scmp.eq.s32.totalorder %s40, 1
      %p58 = por %p56, %p57
      %p60 = scmp.ne.s32.totalorder %s45, %s59
      %p61 = scmp.eq.s32.totalorder %s40, 0
      %p62 = por %p60, %p61
      %s63 = ssub.s32 %s34, %s41
      %p64 = scmp.eq.s32.totalorder %s63, 0
      %s66 = sadd.s32 %s65, 1
      %s67 = scalar_select %p64, %s65, %s66
      %p70 = pneg %p64
      %p71 = scmp.eq.s32.totalorder %s34, 1
      %p72 = por %p70, %p71
      %p73 = scmp.ne.s32.totalorder %s65, %s68
      %p74 = scmp.eq.s32.totalorder %s34, 0
      %p75 = por %p73, %p74
      %p76 = scmp.ne.s32.totalorder %s65, %s68
      %p77 = scmp.eq.s32.totalorder %s39, 1
      %p78 = por %p76, %p77
      %p79 = scmp.ne.s32.totalorder %s68, %s69
      %p80 = scmp.eq.s32.totalorder %s39, 0
      %p81 = por %p79, %p80
      %p82 = scmp.ne.s32.totalorder %s68, %s69
      %p83 = scmp.eq.s32.totalorder %s40, 1
      %p84 = por %p82, %p83
      %p86 = scmp.ne.s32.totalorder %s69, %s85
      %p87 = scmp.eq.s32.totalorder %s40, 0
      %p88 = por %p86, %p87
      %s89 = ssub.s32 %s34, %s41
      %p90 = scmp.eq.s32.totalorder %s89, 0
      %s92 = sadd.s32 %s91, 1
      %s93 = scalar_select %p90, %s91, %s92
      %p96 = pneg %p90
      %p97 = scmp.eq.s32.totalorder %s34, 1
      %p98 = por %p96, %p97
      %p99 = scmp.ne.s32.totalorder %s91, %s94
      %p100 = scmp.eq.s32.totalorder %s34, 0
      %p101 = por %p99, %p100
      %p102 = scmp.ne.s32.totalorder %s91, %s94
      %p103 = scmp.eq.s32.totalorder %s39, 1
      %p104 = por %p102, %p103
      %p105 = scmp.ne.s32.totalorder %s94, %s95
      %p106 = scmp.eq.s32.totalorder %s39, 0
      %p107 = por %p105, %p106
      %p108 = scmp.ne.s32.totalorder %s94, %s95
      %p109 = scmp.eq.s32.totalorder %s40, 1
      %p110 = por %p108, %p109
      %p112 = scmp.ne.s32.totalorder %s95, %s111
      %p113 = scmp.eq.s32.totalorder %s40, 0
      %p114 = por %p112, %p113
      %s116 = sadd.s32 %s115, 1
      %p119 = scmp.eq.s32.totalorder %s34, 1
      %p120 = scmp.ne.s32.totalorder %s115, %s117
      %p121 = scmp.eq.s32.totalorder %s34, 0
      %p122 = por %p120, %p121
      %p123 = scmp.ne.s32.totalorder %s115, %s117
      %p124 = scmp.eq.s32.totalorder %s39, 1
      %p125 = por %p123, %p124
      %p126 = scmp.ne.s32.totalorder %s117, %s118
      %p127 = scmp.eq.s32.totalorder %s39, 0
      %p128 = por %p126, %p127
      %p129 = scmp.ne.s32.totalorder %s117, %s118
      %p130 = scmp.eq.s32.totalorder %s40, 1
      %p131 = por %p129, %p130
      %p133 = scmp.ne.s32.totalorder %s118, %s132
      %p134 = scmp.eq.s32.totalorder %s40, 0
      %p135 = por %p133, %p134
      %s137 = sadd.s32 %s136, 1
      %p140 = scmp.eq.s32.totalorder %s34, 1
      %p141 = scmp.ne.s32.totalorder %s136, %s138
      %p142 = scmp.eq.s32.totalorder %s34, 0
      %p143 = por %p141, %p142
      %p144 = scmp.ne.s32.totalorder %s136, %s138
      %p145 = scmp.eq.s32.totalorder %s39, 1
      %p146 = por %p144, %p145
      %p147 = scmp.ne.s32.totalorder %s138, %s139
      %p148 = scmp.eq.s32.totalorder %s39, 0
      %p149 = por %p147, %p148
      %p150 = scmp.ne.s32.totalorder %s138, %s139
      %p151 = scmp.eq.s32.totalorder %s40, 1
      %p152 = por %p150, %p151
      %p154 = scmp.ne.s32.totalorder %s139, %s153
      %p155 = scmp.eq.s32.totalorder %s40, 0
      %p156 = por %p154, %p155
      %s158 = sadd.s32 %s157, 1
      %p161 = scmp.eq.s32.totalorder %s34, 1
      %p162 = scmp.ne.s32.totalorder %s157, %s159
      %p163 = scmp.eq.s32.totalorder %s34, 0
      %p164 = por %p162, %p163
      %p165 = scmp.ne.s32.totalorder %s157, %s159
      %p166 = scmp.eq.s32.totalorder %s39, 1
      %p167 = por %p165, %p166
      %p168 = scmp.ne.s32.totalorder %s159, %s160
      %p169 = scmp.eq.s32.totalorder %s39, 0
      %p170 = por %p168, %p169
      %p171 = scmp.ne.s32.totalorder %s159, %s160
      %p172 = scmp.eq.s32.totalorder %s40, 1
      %p173 = por %p171, %p172
      %p175 = scmp.ne.s32.totalorder %s160, %s174
      %p176 = scmp.eq.s32.totalorder %s40, 0
      %p177 = por %p175, %p176
      %s179 = sadd.s32 %s178, 1
      %p182 = scmp.eq.s32.totalorder %s34, 1
      %p183 = scmp.ne.s32.totalorder %s178, %s180
      %p184 = scmp.eq.s32.totalorder %s34, 0
      %p185 = por %p183, %p184
      %p186 = scmp.ne.s32.totalorder %s178, %s180
      %p187 = scmp.eq.s32.totalorder %s39, 1
      %p188 = por %p186, %p187
      %p189 = scmp.ne.s32.totalorder %s180, %s181
      %p190 = scmp.eq.s32.totalorder %s39, 0
      %p191 = por %p189, %p190
      %p192 = scmp.ne.s32.totalorder %s180, %s181
      %p193 = scmp.eq.s32.totalorder %s40, 1
      %p194 = por %p192, %p193
      %p196 = scmp.ne.s32.totalorder %s181, %s195
      %p197 = scmp.eq.s32.totalorder %s40, 0
      %p198 = por %p196, %p197
      %s199 = ssub.s32 %s34, %s41
      %p200 = scmp.eq.s32.totalorder %s199, 0
      %s202 = sadd.s32 %s201, 1
      %s203 = scalar_select %p200, %s201, %s202
      %p206 = pneg %p200
      %p207 = scmp.eq.s32.totalorder %s34, 1
      %p208 = por %p206, %p207
      %p209 = scmp.ne.s32.totalorder %s201, %s204
      %p210 = scmp.eq.s32.totalorder %s34, 0
      %p211 = por %p209, %p210
      %p212 = scmp.ne.s32.totalorder %s201, %s204
      %p213 = scmp.eq.s32.totalorder %s39, 1
      %p214 = por %p212, %p213
      %p215 = scmp.ne.s32.totalorder %s204, %s205
      %p216 = scmp.eq.s32.totalorder %s39, 0
      %p217 = por %p215, %p216
      %p218 = scmp.ne.s32.totalorder %s204, %s205
      %p219 = scmp.eq.s32.totalorder %s40, 1
      %p220 = por %p218, %p219
      %p222 = scmp.ne.s32.totalorder %s205, %s221
      %p223 = scmp.eq.s32.totalorder %s40, 0
      %p224 = por %p222, %p223
      %s225 = ssub.s32 %s34, %s41
      %p226 = scmp.eq.s32.totalorder %s225, 0
      %s228 = sadd.s32 %s227, 1
      %s229 = scalar_select %p226, %s227, %s228
      %p232 = pneg %p226
      %p233 = scmp.eq.s32.totalorder %s34, 1
      %p234 = por %p232, %p233
      %p235 = scmp.ne.s32.totalorder %s227, %s230
      %p236 = scmp.eq.s32.totalorder %s34, 0
      %p237 = por %p235, %p236
      %p238 = scmp.ne.s32.totalorder %s227, %s230
      %p239 = scmp.eq.s32.totalorder %s39, 1
      %p240 = por %p238, %p239
      %p241 = scmp.ne.s32.totalorder %s230, %s231
      %p242 = scmp.eq.s32.totalorder %s39, 0
      %p243 = por %p241, %p242
      %p244 = scmp.ne.s32.totalorder %s230, %s231
      %p245 = scmp.eq.s32.totalorder %s40, 1
      %p246 = por %p244, %p245
      %p248 = scmp.ne.s32.totalorder %s231, %s247
      %p249 = scmp.eq.s32.totalorder %s40, 0
      %p250 = por %p248, %p249
      %s251 = ssub.s32 %s34, %s41
      %p252 = scmp.eq.s32.totalorder %s251, 0
      %s254 = sadd.s32 %s253, 1
      %s255 = scalar_select %p252, %s253, %s254
      %p258 = pneg %p252
      %p259 = scmp.eq.s32.totalorder %s34, 1
      %p260 = por %p258, %p259
      %p261 = scmp.ne.s32.totalorder %s253, %s256
      %p262 = scmp.eq.s32.totalorder %s34, 0
      %p263 = por %p261, %p262
      %p264 = scmp.ne.s32.totalorder %s253, %s256
      %p265 = scmp.eq.s32.totalorder %s39, 1
      %p266 = por %p264, %p265
      %p267 = scmp.ne.s32.totalorder %s256, %s257
      %p268 = scmp.eq.s32.totalorder %s39, 0
      %p269 = por %p267, %p268
      %p270 = scmp.ne.s32.totalorder %s256, %s257
      %p271 = scmp.eq.s32.totalorder %s40, 1
      %p272 = por %p270, %p271
      %p274 = scmp.ne.s32.totalorder %s257, %s273
      %p275 = scmp.eq.s32.totalorder %s40, 0
      %p276 = por %p274, %p275
      %s277 = ssub.s32 %s34, %s41
      %p278 = scmp.eq.s32.totalorder %s277, 0
      %s280 = sadd.s32 %s279, 1
      %s281 = scalar_select %p278, %s279, %s280
      %p284 = pneg %p278
      %p285 = scmp.eq.s32.totalorder %s34, 1
      %p286 = por %p284, %p285
      %p287 = scmp.ne.s32.totalorder %s279, %s282
      %p288 = scmp.eq.s32.totalorder %s34, 0
      %p289 = por %p287, %p288
      %p290 = scmp.ne.s32.totalorder %s279, %s282
      %p291 = scmp.eq.s32.totalorder %s39, 1
      %p292 = por %p290, %p291
      %p293 = scmp.ne.s32.totalorder %s282, %s283
      %p294 = scmp.eq.s32.totalorder %s39, 0
      %p295 = por %p293, %p294
      %p296 = scmp.ne.s32.totalorder %s282, %s283
      %p297 = scmp.eq.s32.totalorder %s40, 1
      %p298 = por %p296, %p297
      %p300 = scmp.ne.s32.totalorder %s283, %s299
      %p301 = scmp.eq.s32.totalorder %s40, 0
      %p302 = por %p300, %p301
      %p303 = scmp.le.s32.totalorder 1, %s34
      %p304 = scmp.lt.s32.totalorder %s34, 3
      %p305 = pnand %p303, %p304
      %p306 = pneg %p305
      // Predicated region
      $region9: #{tpu_custom_call.1} parent=5 // pred_check
        _
      $region10: #{tpu_custom_call.1} parent=5 // pred_check_branch
        %308 = sbr.rel (%p305) target = $region12
      $region11: #{tpu_custom_call.1} parent=5 // pred_region
        %s309 = ssub.s32 %s34, 1
        // Predicated region
        $region13: #{tpu_custom_call.1} parent=11 // pred_check
          %p310 = pneg %p55
        $region14: #{tpu_custom_call.1} parent=11 // pred_check_branch
          %312 = sbr.rel (%p310) target = $region16
        $region15: #{tpu_custom_call.1} parent=11 // pred_region
          _
        $region16: #{tpu_custom_call.1} parent=11 // pred_fallthru
          _
        // Predicated region
        $region17: #{tpu_custom_call.1} parent=11 // pred_check
          %p313 = pneg %p128
        $region18: #{tpu_custom_call.1} parent=11 // pred_check_branch
          %315 = sbr.rel (%p313) target = $region20
        $region19: #{tpu_custom_call.1} parent=11 // pred_region
          %317 = vsyncadd [#allocation7], 0
          %s318 = sshll.u32 %s3, 4
          %s319 = int_to_ptr.hbm [resolvable:$true] %s318
          %s320 = sshll.u32 [#allocation8], 4
          %s321 = int_to_ptr.vmem [resolvable:$true] %s320
          %326 = dma.hbm_to_vmem [thread:$0]  %s319, 12288, %s321, [#allocation7], 64, 64, 4
        $region20: #{tpu_custom_call.1} parent=11 // pred_fallthru
          _
        // Predicated region
        $region21: #{tpu_custom_call.1} parent=11 // pred_check
          %p327 = pneg %p149
        $region22: #{tpu_custom_call.1} parent=11 // pred_check_branch
          %329 = sbr.rel (%p327) target = $region24
        $region23: #{tpu_custom_call.1} parent=11 // pred_region
          %331 = vsyncadd [#allocation10], 0
          %s332 = sshll.u32 %s4, 4
          %s333 = int_to_ptr.hbm [resolvable:$true] %s332
          %s334 = sshll.u32 [#allocation9], 4
          %s335 = int_to_ptr.vmem [resolvable:$true] %s334
          %340 = dma.hbm_to_vmem [thread:$0]  %s333, 192, %s335, [#allocation10], 16, 16, 1
        $region24: #{tpu_custom_call.1} parent=11 // pred_fallthru
          _
        // Predicated region
        $region25: #{tpu_custom_call.1} parent=11 // pred_check
          %p341 = pneg %p170
        $region26: #{tpu_custom_call.1} parent=11 // pred_check_branch
          %343 = sbr.rel (%p341) target = $region28
        $region27: #{tpu_custom_call.1} parent=11 // pred_region
          _
        $region28: #{tpu_custom_call.1} parent=11 // pred_fallthru
          _
        // Predicated region
        $region29: #{tpu_custom_call.1} parent=11 // pred_check
          %p344 = pneg %p191
        $region30: #{tpu_custom_call.1} parent=11 // pred_check_branch
          %346 = sbr.rel (%p344) target = $region32
        $region31: #{tpu_custom_call.1} parent=11 // pred_region
          _
        $region32: #{tpu_custom_call.1} parent=11 // pred_fallthru
          _
      $region12: #{tpu_custom_call.1} parent=5 // pred_fallthru
        _
      %p347 = scmp.lt.s32.totalorder %s34, 2
      // Predicated region
      $region33: #{tpu_custom_call.1} parent=5 // pred_check
        %p348 = pneg %p347
      $region34: #{tpu_custom_call.1} parent=5 // pred_check_branch
        %350 = sbr.rel (%p348) target = $region36
      $region35: #{tpu_custom_call.1} parent=5 // pred_region
        // Predicated region
        $region37: #{tpu_custom_call.1} parent=35 // pred_check
          %p351 = pneg %p75
        $region38: #{tpu_custom_call.1} parent=35 // pred_check_branch
          %353 = sbr.rel (%p351) target = $region40
        $region39: #{tpu_custom_call.1} parent=35 // pred_region
          %s354 = sand.u32 %s65, 1
          %s355 = scalar_lea.sflag [#allocation4], %s354
          %s356 = sand.u32 %s65, 1
          %s357 = smul.addr %s356, 16
          %s358 = scalar_lea.vmem [#allocation3], %s357
          %s359 = smul.u32 4, %s34
          %361 = vsyncadd %s355, 0
          %s362 = smul.addr %s359, 4
          %s363 = scalar_lea.hbm %s1, %s362
          %s364 = sshll.u32 %s363, 4
          %s365 = int_to_ptr.hbm [resolvable:$true] %s364
          %s366 = sshll.u32 %s358, 4
          %s367 = int_to_ptr.vmem [resolvable:$true] %s366
          %372 = dma.hbm_to_vmem [thread:$0]  %s365, 256, %s367, %s355, 64, 64, 4
        $region40: #{tpu_custom_call.1} parent=35 // pred_fallthru
          _
        // Predicated region
        $region41: #{tpu_custom_call.1} parent=35 // pred_check
          %p373 = pneg %p101
        $region42: #{tpu_custom_call.1} parent=35 // pred_check_branch
          %375 = sbr.rel (%p373) target = $region44
        $region43: #{tpu_custom_call.1} parent=35 // pred_region
          %s376 = sand.u32 %s34, 1
          %s377 = scalar_lea.sflag [#allocation7], %s376
          %s378 = sand.u32 %s91, 1
          %s379 = smul.addr %s378, 32
          %s380 = scalar_lea.vmem [#allocation6], %s379
          %s381 = smul.u32 4, %s34
          %383 = vsyncadd %s377, 0
          %s384 = smul.addr %s381, 8
          %s385 = scalar_lea.hbm %s2, %s384
          %s386 = sshll.u32 %s385, 4
          %s387 = int_to_ptr.hbm [resolvable:$true] %s386
          %s388 = sshll.u32 %s380, 4
          %s389 = int_to_ptr.vmem [resolvable:$true] %s388
          %394 = dma.hbm_to_vmem [thread:$0]  %s387, 512, %s389, %s377, 128, 128, 8
        $region44: #{tpu_custom_call.1} parent=35 // pred_fallthru
          _
      $region36: #{tpu_custom_call.1} parent=5 // pred_fallthru
        _
      %p395 = scmp.le.s32.totalorder 1, %s34
      %p396 = scmp.lt.s32.totalorder %s34, 3
      %p397 = pnand %p395, %p396
      %p398 = pneg %p397
      // Predicated region
      $region45: #{tpu_custom_call.1} parent=5 // pred_check
        _
      $region46: #{tpu_custom_call.1} parent=5 // pred_check_branch
        %400 = sbr.rel (%p397) target = $region48
      $region47: #{tpu_custom_call.1} parent=5 // pred_region
        %s401 = ssub.s32 %s34, 1
        %s402 = sand.u32 %s68, 1
        %s403 = scalar_lea.sflag [#allocation4], %s402
        %s404 = sand.u32 %s68, 1
        %s405 = smul.addr %s404, 16
        %s406 = scalar_lea.vmem [#allocation3], %s405
        // Predicated region
        $region49: #{tpu_custom_call.1} parent=47 // pred_check
          %p407 = pneg %p81
        $region50: #{tpu_custom_call.1} parent=47 // pred_check_branch
          %409 = sbr.rel (%p407) target = $region52
        $region51: #{tpu_custom_call.1} parent=47 // pred_region
          %411 = dma.done %s403, 256
        $region52: #{tpu_custom_call.1} parent=47 // pred_fallthru
          _
        %s412 = sand.u32 %s39, 1
        %s413 = scalar_lea.sflag [#allocation7], %s412
        %s414 = sand.u32 %s94, 1
        %s415 = smul.addr %s414, 32
        %s416 = scalar_lea.vmem [#allocation6], %s415
        // Predicated region
        $region53: #{tpu_custom_call.1} parent=47 // pred_check
          %p417 = pneg %p107
        $region54: #{tpu_custom_call.1} parent=47 // pred_check_branch
          %419 = sbr.rel (%p417) target = $region56
        $region55: #{tpu_custom_call.1} parent=47 // pred_region
          %421 = dma.done %s413, 512
        $region56: #{tpu_custom_call.1} parent=47 // pred_fallthru
          _
        // Predicated region
        $region57: #{tpu_custom_call.1} parent=47 // pred_check
          %p422 = pneg %p128
        $region58: #{tpu_custom_call.1} parent=47 // pred_check_branch
          %424 = sbr.rel (%p422) target = $region60
        $region59: #{tpu_custom_call.1} parent=47 // pred_region
          %426 = dma.done [#allocation7], 12288
        $region60: #{tpu_custom_call.1} parent=47 // pred_fallthru
          _
        // Predicated region
        $region61: #{tpu_custom_call.1} parent=47 // pred_check
          %p427 = pneg %p149
        $region62: #{tpu_custom_call.1} parent=47 // pred_check_branch
          %429 = sbr.rel (%p427) target = $region64
        $region63: #{tpu_custom_call.1} parent=47 // pred_region
          %431 = dma.done [#allocation10], 192
        $region64: #{tpu_custom_call.1} parent=47 // pred_fallthru
          _
        %p432 = pneg %p55
        %p433 = pneg %p52
        %s434 = sand.u32 %s68, 1
        %s435 = scalar_lea.sflag [#allocation4], %s434
        %s436 = sand.u32 %s68, 1
        %s437 = smul.addr %s436, 16
        %s438 = scalar_lea.vmem [#allocation3], %s437
        %p439 = pneg %p81
        %p440 = pneg %p78
        %s441 = sand.u32 %s39, 1
        %s442 = scalar_lea.sflag [#allocation7], %s441
        %s443 = sand.u32 %s94, 1
        %s444 = smul.addr %s443, 32
        %s445 = scalar_lea.vmem [#allocation6], %s444
        %p446 = pneg %p107
        %p447 = pneg %p104
        %p448 = pneg %p128
        %p449 = pneg %p125
        %p450 = pneg %p149
        %p451 = pneg %p146
        %p452 = pneg %p170
        %p453 = pneg %p167
        %p454 = pneg %p191
        %p455 = pneg %p188
        %p456 = pneg %p217
        %p457 = pneg %p214
        %s458 = sand.u32 %s204, 1
        %s459 = scalar_lea.sflag [#allocation5], %s458
        %s460 = sand.u32 %s204, 1
        %s461 = smul.addr %s460, 32
        %s462 = scalar_lea.vmem [#allocation11], %s461
        %p463 = pneg %p243
        %p464 = pneg %p240
        %s465 = sand.u32 %s39, 1
        %s466 = scalar_lea.sflag [#allocation13], %s465
        %s467 = sand.u32 %s230, 1
        %s468 = smul.addr %s467, 32
        %s469 = scalar_lea.vmem [#allocation12], %s468
        %p470 = pneg %p269
        %p471 = pneg %p266
        %s472 = sand.u32 %s39, 1
        %s473 = scalar_lea.sflag [#allocation13], %s472
        %s474 = sand.u32 %s256, 1
        %s475 = smul.addr %s474, 32
        %s476 = scalar_lea.vmem [#allocation14], %s475
        %p477 = pneg %p295
        %p478 = pneg %p292
        %s479 = sand.u32 %s282, 1
        %s480 = scalar_lea.sflag [#allocation16], %s479
        %s481 = sand.u32 %s282, 1
        %s482 = smul.addr %s481, 32
        %s483 = scalar_lea.vmem [#allocation15], %s482
        %s484 = smul.u32 4, %s39
        %s485 = smul.u32 4, %s39
        %s486 = smul.u32 4, %s39
        %s487 = smul.u32 4, %s39
        %s488 = smul.u32 4, %s39
        %s489 = smul.u32 4, %s39
        %s490 = sld [smem:[#allocation2]]
        %v491 = vlaneseq
        %v492 = vand.u32 %v491, 127
        %v493 = vld [vmem:[%s406] sm:$0xf]
        %v494 = vld [vmem:[%s406 + $0x4] sm:$0xf]
        %v495 = vld [vmem:[%s406 + $0x8] sm:$0xf]
        %v496 = vld [vmem:[%s406 + $0xc] sm:$0xf]
        %v497 = vld [vmem:[%s5] sm:$0x1]
        %v498 = vstv %s490
        %v499 = vmul.f32 %v498, %v497
        %v500 = vld [vmem:[#allocation8] sm:$0xf]
        %v501 = vld [vmem:[#allocation8 + $0x4] sm:$0xf]
        %v502 = vld [vmem:[#allocation8 + $0x8] sm:$0xf]
        %v503 = vld [vmem:[#allocation8 + $0xc] sm:$0xf]
        %v504 = vld [vmem:[#allocation8 + $0x10] sm:$0xf]
        %v505 = vld [vmem:[#allocation8 + $0x14] sm:$0xf]
        %v506 = vld [vmem:[#allocation8 + $0x18] sm:$0xf]
        %v507 = vld [vmem:[#allocation8 + $0x1c] sm:$0xf]
        %v508 = vld [vmem:[#allocation8 + $0x20] sm:$0xf]
        %v509 = vld [vmem:[#allocation8 + $0x24] sm:$0xf]
        %v510 = vld [vmem:[#allocation8 + $0x28] sm:$0xf]
        %v511 = vld [vmem:[#allocation8 + $0x2c] sm:$0xf]
        %v512 = vld [vmem:[#allocation8 + $0x30] sm:$0xf]
        %v513 = vld [vmem:[#allocation8 + $0x34] sm:$0xf]
        %v514 = vld [vmem:[#allocation8 + $0x38] sm:$0xf]
        %v515 = vld [vmem:[#allocation8 + $0x3c] sm:$0xf]
        %v517 = vperm.slane %v499, 0
        %v523 = vunpack.c.l.b16 %v493
        %v524 = vunpack.c.l.b16 %v494
        %v525 = vunpack.c.l.b16 %v495
        %v526 = vunpack.c.l.b16 %v496
        %v527 = vpack.c.b16 %v524, %v523
        %v528 = vpack.c.b16 %v526, %v525
        %v547 = vunpack.c.l.b16 %v500
        %v548 = vunpack.c.l.b16 %v501
        %v549 = vunpack.c.l.b16 %v502
        %v550 = vunpack.c.l.b16 %v503
        %v551 = vunpack.c.l.b16 %v504
        %v552 = vunpack.c.l.b16 %v505
        %v553 = vunpack.c.l.b16 %v506
        %v554 = vunpack.c.l.b16 %v507
        %v555 = vunpack.c.l.b16 %v508
        %v556 = vunpack.c.l.b16 %v509
        %v557 = vunpack.c.l.b16 %v510
        %v558 = vunpack.c.l.b16 %v511
        %v559 = vunpack.c.l.b16 %v512
        %v560 = vunpack.c.l.b16 %v513
        %v561 = vunpack.c.l.b16 %v514
        %v562 = vunpack.c.l.b16 %v515
        %v563 = vpack.c.b16 %v548, %v547
        %v564 = vpack.c.b16 %v550, %v549
        %v565 = vpack.c.b16 %v552, %v551
        %v566 = vpack.c.b16 %v554, %v553
        %v567 = vpack.c.b16 %v556, %v555
        %v568 = vpack.c.b16 %v558, %v557
        %v569 = vpack.c.b16 %v560, %v559
        %v570 = vpack.c.b16 %v562, %v561
        %579 = vmatpush.bf16.msra.mxu0 %v570
        %580 = vmatpush.bf16.msra.mxu0 %v569
        %581 = vmatpush.bf16.msra.mxu0 %v568
        %582 = vmatpush.bf16.msra.mxu0 %v567
        %583 = vmatpush.bf16.msra.mxu0 %v566
        %584 = vmatpush.bf16.msra.mxu0 %v565
        %585 = vmatpush.bf16.msra.mxu0 %v564
        %586 = vmatpush.bf16.msra.mxu0 %v563
        %587 = vmatmul.bf16.gmra.mxu0 %v527
        %v588 = vpop.f32.mrf.mxu0
        %v589 = vadd.f32 %v517, %v588
        %v590 = vpop.f32.mrf.mxu0
        %v591 = vadd.f32 %v517, %v590
        %592 = vmatmul.bf16.gmra.mxu0 %v528
        %v593 = vpop.f32.mrf.mxu0
        %v594 = vadd.f32 %v517, %v593
        %v595 = vpop.f32.mrf.mxu0
        %v596 = vadd.f32 %v517, %v595
        %597 = vdwg.mxu0
        %v598 = vld [vmem:[#allocation9] sm:$0x1]
        %v600 = vperm.slane %v598, 0
        %v602 = vadd.f32 %v589, %v600
        %v603 = vadd.f32 %v591, %v600
        %v604 = vadd.f32 %v594, %v600
        %v605 = vadd.f32 %v596, %v600
        %v606 = vmax.f32 %v602, 0.0
        %v607 = vmax.f32 %v603, 0.0
        %v608 = vmax.f32 %v604, 0.0
        %v609 = vmax.f32 %v605, 0.0
        %v610 = vpack.c.bf16 %v607, %v606
        %v611 = vpack.c.bf16 %v609, %v608
        %s612 = scalar_lea.vmem [#allocation8], 64
        %v613 = vld [vmem:[%s612] sm:$0xf]
        %v614 = vld [vmem:[%s612 + $0x4] sm:$0xf]
        %v615 = vld [vmem:[%s612 + $0x8] sm:$0xf]
        %v616 = vld [vmem:[%s612 + $0xc] sm:$0xf]
        %v617 = vld [vmem:[%s612 + $0x10] sm:$0xf]
        %v618 = vld [vmem:[%s612 + $0x14] sm:$0xf]
        %v619 = vld [vmem:[%s612 + $0x18] sm:$0xf]
        %v620 = vld [vmem:[%s612 + $0x1c] sm:$0xf]
        %v621 = vld [vmem:[%s612 + $0x20] sm:$0xf]
        %v622 = vld [vmem:[%s612 + $0x24] sm:$0xf]
        %v623 = vld [vmem:[%s612 + $0x28] sm:$0xf]
        %v624 = vld [vmem:[%s612 + $0x2c] sm:$0xf]
        %v625 = vld [vmem:[%s612 + $0x30] sm:$0xf]
        %v626 = vld [vmem:[%s612 + $0x34] sm:$0xf]
        %v627 = vld [vmem:[%s612 + $0x38] sm:$0xf]
        %v628 = vld [vmem:[%s612 + $0x3c] sm:$0xf]
        %s629 = scalar_lea.vmem [#allocation9], 1
        %v630 = vld [vmem:[%s629] sm:$0x1]
        %v632 = vperm.slane %v630, 0
        %v650 = vunpack.c.l.b16 %v613
        %v651 = vunpack.c.l.b16 %v614
        %v652 = vunpack.c.l.b16 %v615
        %v653 = vunpack.c.l.b16 %v616
        %v654 = vunpack.c.l.b16 %v617
        %v655 = vunpack.c.l.b16 %v618
        %v656 = vunpack.c.l.b16 %v619
        %v657 = vunpack.c.l.b16 %v620
        %v658 = vunpack.c.l.b16 %v621
        %v659 = vunpack.c.l.b16 %v622
        %v660 = vunpack.c.l.b16 %v623
        %v661 = vunpack.c.l.b16 %v624
        %v662 = vunpack.c.l.b16 %v625
        %v663 = vunpack.c.l.b16 %v626
        %v664 = vunpack.c.l.b16 %v627
        %v665 = vunpack.c.l.b16 %v628
        %v666 = vpack.c.b16 %v651, %v650
        %v667 = vpack.c.b16 %v653, %v652
        %v668 = vpack.c.b16 %v655, %v654
        %v669 = vpack.c.b16 %v657, %v656
        %v670 = vpack.c.b16 %v659, %v658
        %v671 = vpack.c.b16 %v661, %v660
        %v672 = vpack.c.b16 %v663, %v662
        %v673 = vpack.c.b16 %v665, %v664
        %682 = vmatpush.bf16.msra.mxu0 %v673
        %683 = vmatpush.bf16.msra.mxu0 %v672
        %684 = vmatpush.bf16.msra.mxu0 %v671
        %685 = vmatpush.bf16.msra.mxu0 %v670
        %686 = vmatpush.bf16.msra.mxu0 %v669
        %687 = vmatpush.bf16.msra.mxu0 %v668
        %688 = vmatpush.bf16.msra.mxu0 %v667
        %689 = vmatpush.bf16.msra.mxu0 %v666
        %690 = vmatmul.bf16.gmra.mxu0 %v610
        %v691 = vpop.f32.mrf.mxu0
        %v692 = vadd.f32 %v632, %v691
        %v693 = vpop.f32.mrf.mxu0
        %v694 = vadd.f32 %v632, %v693
        %695 = vmatmul.bf16.gmra.mxu0 %v611
        %v696 = vpop.f32.mrf.mxu0
        %v697 = vadd.f32 %v632, %v696
        %v698 = vpop.f32.mrf.mxu0
        %v699 = vadd.f32 %v632, %v698
        %700 = vdwg.mxu0
        %v701 = vmax.f32 %v692, 0.0
        %v702 = vmax.f32 %v694, 0.0
        %v703 = vmax.f32 %v697, 0.0
        %v704 = vmax.f32 %v699, 0.0
        %v705 = vpack.c.bf16 %v702, %v701
        %v706 = vpack.c.bf16 %v704, %v703
        %s707 = scalar_lea.vmem [#allocation8], 128
        %v708 = vld [vmem:[%s707] sm:$0xf]
        %v709 = vld [vmem:[%s707 + $0x4] sm:$0xf]
        %v710 = vld [vmem:[%s707 + $0x8] sm:$0xf]
        %v711 = vld [vmem:[%s707 + $0xc] sm:$0xf]
        %v712 = vld [vmem:[%s707 + $0x10] sm:$0xf]
        %v713 = vld [vmem:[%s707 + $0x14] sm:$0xf]
        %v714 = vld [vmem:[%s707 + $0x18] sm:$0xf]
        %v715 = vld [vmem:[%s707 + $0x1c] sm:$0xf]
        %v716 = vld [vmem:[%s707 + $0x20] sm:$0xf]
        %v717 = vld [vmem:[%s707 + $0x24] sm:$0xf]
        %v718 = vld [vmem:[%s707 + $0x28] sm:$0xf]
        %v719 = vld [vmem:[%s707 + $0x2c] sm:$0xf]
        %v720 = vld [vmem:[%s707 + $0x30] sm:$0xf]
        %v721 = vld [vmem:[%s707 + $0x34] sm:$0xf]
        %v722 = vld [vmem:[%s707 + $0x38] sm:$0xf]
        %v723 = vld [vmem:[%s707 + $0x3c] sm:$0xf]
        %s724 = scalar_lea.vmem [#allocation9], 2
        %v725 = vld [vmem:[%s724] sm:$0x1]
        %v727 = vperm.slane %v725, 0
        %v745 = vunpack.c.l.b16 %v708
        %v746 = vunpack.c.l.b16 %v709
        %v747 = vunpack.c.l.b16 %v710
        %v748 = vunpack.c.l.b16 %v711
        %v749 = vunpack.c.l.b16 %v712
        %v750 = vunpack.c.l.b16 %v713
        %v751 = vunpack.c.l.b16 %v714
        %v752 = vunpack.c.l.b16 %v715
        %v753 = vunpack.c.l.b16 %v716
        %v754 = vunpack.c.l.b16 %v717
        %v755 = vunpack.c.l.b16 %v718
        %v756 = vunpack.c.l.b16 %v719
        %v757 = vunpack.c.l.b16 %v720
        %v758 = vunpack.c.l.b16 %v721
        %v759 = vunpack.c.l.b16 %v722
        %v760 = vunpack.c.l.b16 %v723
        %v761 = vpack.c.b16 %v746, %v745
        %v762 = vpack.c.b16 %v748, %v747
        %v763 = vpack.c.b16 %v750, %v749
        %v764 = vpack.c.b16 %v752, %v751
        %v765 = vpack.c.b16 %v754, %v753
        %v766 = vpack.c.b16 %v756, %v755
        %v767 = vpack.c.b16 %v758, %v757
        %v768 = vpack.c.b16 %v760, %v759
        %777 = vmatpush.bf16.msra.mxu0 %v768
        %778 = vmatpush.bf16.msra.mxu0 %v767
        %779 = vmatpush.bf16.msra.mxu0 %v766
        %780 = vmatpush.bf16.msra.mxu0 %v765
        %781 = vmatpush.bf16.msra.mxu0 %v764
        %782 = vmatpush.bf16.msra.mxu0 %v763
        %783 = vmatpush.bf16.msra.mxu0 %v762
        %784 = vmatpush.bf16.msra.mxu0 %v761
        %785 = vmatmul.bf16.gmra.mxu0 %v705
        %v786 = vpop.f32.mrf.mxu0
        %v787 = vadd.f32 %v727, %v786
        %v788 = vpop.f32.mrf.mxu0
        %v789 = vadd.f32 %v727, %v788
        %790 = vmatmul.bf16.gmra.mxu0 %v706
        %v791 = vpop.f32.mrf.mxu0
        %v792 = vadd.f32 %v727, %v791
        %v793 = vpop.f32.mrf.mxu0
        %v794 = vadd.f32 %v727, %v793
        %795 = vdwg.mxu0
        %v796 = vmax.f32 %v787, 0.0
        %v797 = vmax.f32 %v789, 0.0
        %v798 = vmax.f32 %v792, 0.0
        %v799 = vmax.f32 %v794, 0.0
        %v800 = vpack.c.bf16 %v797, %v796
        %v801 = vpack.c.bf16 %v799, %v798
        %s802 = scalar_lea.vmem [#allocation8], 192
        %v803 = vld [vmem:[%s802] sm:$0xf]
        %v804 = vld [vmem:[%s802 + $0x4] sm:$0xf]
        %v805 = vld [vmem:[%s802 + $0x8] sm:$0xf]
        %v806 = vld [vmem:[%s802 + $0xc] sm:$0xf]
        %v807 = vld [vmem:[%s802 + $0x10] sm:$0xf]
        %v808 = vld [vmem:[%s802 + $0x14] sm:$0xf]
        %v809 = vld [vmem:[%s802 + $0x18] sm:$0xf]
        %v810 = vld [vmem:[%s802 + $0x1c] sm:$0xf]
        %v811 = vld [vmem:[%s802 + $0x20] sm:$0xf]
        %v812 = vld [vmem:[%s802 + $0x24] sm:$0xf]
        %v813 = vld [vmem:[%s802 + $0x28] sm:$0xf]
        %v814 = vld [vmem:[%s802 + $0x2c] sm:$0xf]
        %v815 = vld [vmem:[%s802 + $0x30] sm:$0xf]
        %v816 = vld [vmem:[%s802 + $0x34] sm:$0xf]
        %v817 = vld [vmem:[%s802 + $0x38] sm:$0xf]
        %v818 = vld [vmem:[%s802 + $0x3c] sm:$0xf]
        %s819 = scalar_lea.vmem [#allocation9], 3
        %v820 = vld [vmem:[%s819] sm:$0x1]
        %v822 = vperm.slane %v820, 0
        %v840 = vunpack.c.l.b16 %v803
        %v841 = vunpack.c.l.b16 %v804
        %v842 = vunpack.c.l.b16 %v805
        %v843 = vunpack.c.l.b16 %v806
        %v844 = vunpack.c.l.b16 %v807
        %v845 = vunpack.c.l.b16 %v808
        %v846 = vunpack.c.l.b16 %v809
        %v847 = vunpack.c.l.b16 %v810
        %v848 = vunpack.c.l.b16 %v811
        %v849 = vunpack.c.l.b16 %v812
        %v850 = vunpack.c.l.b16 %v813
        %v851 = vunpack.c.l.b16 %v814
        %v852 = vunpack.c.l.b16 %v815
        %v853 = vunpack.c.l.b16 %v816
        %v854 = vunpack.c.l.b16 %v817
        %v855 = vunpack.c.l.b16 %v818
        %v856 = vpack.c.b16 %v841, %v840
        %v857 = vpack.c.b16 %v843, %v842
        %v858 = vpack.c.b16 %v845, %v844
        %v859 = vpack.c.b16 %v847, %v846
        %v860 = vpack.c.b16 %v849, %v848
        %v861 = vpack.c.b16 %v851, %v850
        %v862 = vpack.c.b16 %v853, %v852
        %v863 = vpack.c.b16 %v855, %v854
        %872 = vmatpush.bf16.msra.mxu0 %v863
        %873 = vmatpush.bf16.msra.mxu0 %v862
        %874 = vmatpush.bf16.msra.mxu0 %v861
        %875 = vmatpush.bf16.msra.mxu0 %v860
        %876 = vmatpush.bf16.msra.mxu0 %v859
        %877 = vmatpush.bf16.msra.mxu0 %v858
        %878 = vmatpush.bf16.msra.mxu0 %v857
        %879 = vmatpush.bf16.msra.mxu0 %v856
        %880 = vmatmul.bf16.gmra.mxu0 %v800
        %v881 = vpop.f32.mrf.mxu0
        %v882 = vadd.f32 %v822, %v881
        %v883 = vpop.f32.mrf.mxu0
        %v884 = vadd.f32 %v822, %v883
        %885 = vmatmul.bf16.gmra.mxu0 %v801
        %v886 = vpop.f32.mrf.mxu0
        %v887 = vadd.f32 %v822, %v886
        %v888 = vpop.f32.mrf.mxu0
        %v889 = vadd.f32 %v822, %v888
        %890 = vdwg.mxu0
        %v891 = vmax.f32 %v882, 0.0
        %v892 = vmax.f32 %v884, 0.0
        %v893 = vmax.f32 %v887, 0.0
        %v894 = vmax.f32 %v889, 0.0
        %v895 = vpack.c.bf16 %v892, %v891
        %v896 = vpack.c.bf16 %v894, %v893
        %s897 = scalar_lea.vmem [#allocation8], 256
        %v898 = vld [vmem:[%s897] sm:$0xf]
        %v899 = vld [vmem:[%s897 + $0x4] sm:$0xf]
        %v900 = vld [vmem:[%s897 + $0x8] sm:$0xf]
        %v901 = vld [vmem:[%s897 + $0xc] sm:$0xf]
        %v902 = vld [vmem:[%s897 + $0x10] sm:$0xf]
        %v903 = vld [vmem:[%s897 + $0x14] sm:$0xf]
        %v904 = vld [vmem:[%s897 + $0x18] sm:$0xf]
        %v905 = vld [vmem:[%s897 + $0x1c] sm:$0xf]
        %v906 = vld [vmem:[%s897 + $0x20] sm:$0xf]
        %v907 = vld [vmem:[%s897 + $0x24] sm:$0xf]
        %v908 = vld [vmem:[%s897 + $0x28] sm:$0xf]
        %v909 = vld [vmem:[%s897 + $0x2c] sm:$0xf]
        %v910 = vld [vmem:[%s897 + $0x30] sm:$0xf]
        %v911 = vld [vmem:[%s897 + $0x34] sm:$0xf]
        %v912 = vld [vmem:[%s897 + $0x38] sm:$0xf]
        %v913 = vld [vmem:[%s897 + $0x3c] sm:$0xf]
        %s914 = scalar_lea.vmem [#allocation9], 4
        %v915 = vld [vmem:[%s914] sm:$0x1]
        %v917 = vperm.slane %v915, 0
        %v935 = vunpack.c.l.b16 %v898
        %v936 = vunpack.c.l.b16 %v899
        %v937 = vunpack.c.l.b16 %v900
        %v938 = vunpack.c.l.b16 %v901
        %v939 = vunpack.c.l.b16 %v902
        %v940 = vunpack.c.l.b16 %v903
        %v941 = vunpack.c.l.b16 %v904
        %v942 = vunpack.c.l.b16 %v905
        %v943 = vunpack.c.l.b16 %v906
        %v944 = vunpack.c.l.b16 %v907
        %v945 = vunpack.c.l.b16 %v908
        %v946 = vunpack.c.l.b16 %v909
        %v947 = vunpack.c.l.b16 %v910
        %v948 = vunpack.c.l.b16 %v911
        %v949 = vunpack.c.l.b16 %v912
        %v950 = vunpack.c.l.b16 %v913
        %v951 = vpack.c.b16 %v936, %v935
        %v952 = vpack.c.b16 %v938, %v937
        %v953 = vpack.c.b16 %v940, %v939
        %v954 = vpack.c.b16 %v942, %v941
        %v955 = vpack.c.b16 %v944, %v943
        %v956 = vpack.c.b16 %v946, %v945
        %v957 = vpack.c.b16 %v948, %v947
        %v958 = vpack.c.b16 %v950, %v949
        %967 = vmatpush.bf16.msra.mxu0 %v958
        %968 = vmatpush.bf16.msra.mxu0 %v957
        %969 = vmatpush.bf16.msra.mxu0 %v956
        %970 = vmatpush.bf16.msra.mxu0 %v955
        %971 = vmatpush.bf16.msra.mxu0 %v954
        %972 = vmatpush.bf16.msra.mxu0 %v953
        %973 = vmatpush.bf16.msra.mxu0 %v952
        %974 = vmatpush.bf16.msra.mxu0 %v951
        %975 = vmatmul.bf16.gmra.mxu0 %v895
        %v976 = vpop.f32.mrf.mxu0
        %v977 = vadd.f32 %v917, %v976
        %v978 = vpop.f32.mrf.mxu0
        %v979 = vadd.f32 %v917, %v978
        %980 = vmatmul.bf16.gmra.mxu0 %v896
        %v981 = vpop.f32.mrf.mxu0
        %v982 = vadd.f32 %v917, %v981
        %v983 = vpop.f32.mrf.mxu0
        %v984 = vadd.f32 %v917, %v983
        %985 = vdwg.mxu0
        %v986 = vtanh.pop %v977
        %v987 = vtanh.pop %v979
        %v988 = vtanh.pop %v982
        %v989 = vtanh.pop %v984
        %v990 = vpack.c.bf16 %v987, %v986
        %v991 = vpack.c.bf16 %v989, %v988
        %s992 = scalar_lea.vmem [#allocation8], 320
        %v993 = vld [vmem:[%s992] sm:$0xf]
        %v994 = vld [vmem:[%s992 + $0x4] sm:$0xf]
        %v995 = vld [vmem:[%s992 + $0x8] sm:$0xf]
        %v996 = vld [vmem:[%s992 + $0xc] sm:$0xf]
        %v997 = vld [vmem:[%s992 + $0x10] sm:$0xf]
        %v998 = vld [vmem:[%s992 + $0x14] sm:$0xf]
        %v999 = vld [vmem:[%s992 + $0x18] sm:$0xf]
        %v1000 = vld [vmem:[%s992 + $0x1c] sm:$0xf]
        %v1001 = vld [vmem:[%s992 + $0x20] sm:$0xf]
        %v1002 = vld [vmem:[%s992 + $0x24] sm:$0xf]
        %v1003 = vld [vmem:[%s992 + $0x28] sm:$0xf]
        %v1004 = vld [vmem:[%s992 + $0x2c] sm:$0xf]
        %v1005 = vld [vmem:[%s992 + $0x30] sm:$0xf]
        %v1006 = vld [vmem:[%s992 + $0x34] sm:$0xf]
        %v1007 = vld [vmem:[%s992 + $0x38] sm:$0xf]
        %v1008 = vld [vmem:[%s992 + $0x3c] sm:$0xf]
        %s1009 = scalar_lea.vmem [#allocation9], 5
        %v1010 = vld [vmem:[%s1009] sm:$0x1]
        %v1012 = vperm.slane %v1010, 0
        %v1030 = vunpack.c.l.b16 %v993
        %v1031 = vunpack.c.l.b16 %v994
        %v1032 = vunpack.c.l.b16 %v995
        %v1033 = vunpack.c.l.b16 %v996
        %v1034 = vunpack.c.l.b16 %v997
        %v1035 = vunpack.c.l.b16 %v998
        %v1036 = vunpack.c.l.b16 %v999
        %v1037 = vunpack.c.l.b16 %v1000
        %v1038 = vunpack.c.l.b16 %v1001
        %v1039 = vunpack.c.l.b16 %v1002
        %v1040 = vunpack.c.l.b16 %v1003
        %v1041 = vunpack.c.l.b16 %v1004
        %v1042 = vunpack.c.l.b16 %v1005
        %v1043 = vunpack.c.l.b16 %v1006
        %v1044 = vunpack.c.l.b16 %v1007
        %v1045 = vunpack.c.l.b16 %v1008
        %v1046 = vpack.c.b16 %v1031, %v1030
        %v1047 = vpack.c.b16 %v1033, %v1032
        %v1048 = vpack.c.b16 %v1035, %v1034
        %v1049 = vpack.c.b16 %v1037, %v1036
        %v1050 = vpack.c.b16 %v1039, %v1038
        %v1051 = vpack.c.b16 %v1041, %v1040
        %v1052 = vpack.c.b16 %v1043, %v1042
        %v1053 = vpack.c.b16 %v1045, %v1044
        %1062 = vmatpush.bf16.msra.mxu0 %v1053
        %1063 = vmatpush.bf16.msra.mxu0 %v1052
        %1064 = vmatpush.bf16.msra.mxu0 %v1051
        %1065 = vmatpush.bf16.msra.mxu0 %v1050
        %1066 = vmatpush.bf16.msra.mxu0 %v1049
        %1067 = vmatpush.bf16.msra.mxu0 %v1048
        %1068 = vmatpush.bf16.msra.mxu0 %v1047
        %1069 = vmatpush.bf16.msra.mxu0 %v1046
        %1070 = vmatmul.bf16.gmra.mxu0 %v990
        %v1071 = vpop.f32.mrf.mxu0
        %v1072 = vadd.f32 %v1012, %v1071
        %v1073 = vpop.f32.mrf.mxu0
        %v1074 = vadd.f32 %v1012, %v1073
        %1075 = vmatmul.bf16.gmra.mxu0 %v991
        %v1076 = vpop.f32.mrf.mxu0
        %v1077 = vadd.f32 %v1012, %v1076
        %v1078 = vpop.f32.mrf.mxu0
        %v1079 = vadd.f32 %v1012, %v1078
        %1080 = vdwg.mxu0
        %vm1081 = vcmp.lt.s32.totalorder %v492, 64
        %v1082 = vsel %vm1081, %v1072, 0.0
        %v1083 = vsel %vm1081, %v1074, 0.0
        %v1084 = vsel %vm1081, %v1077, 0.0
        %v1085 = vsel %vm1081, %v1079, 0.0
        %1086 = vrot.lane.b32.xlu0 %v1072, 64
        %v1087 = vpop.permute.xlu0 %1086
        %1088 = vrot.lane.b32.xlu0 %v1074, 64
        %v1089 = vpop.permute.xlu0 %1088
        %1090 = vrot.lane.b32.xlu0 %v1077, 64
        %v1091 = vpop.permute.xlu0 %1090
        %1092 = vrot.lane.b32.xlu0 %v1079, 64
        %v1093 = vpop.permute.xlu0 %1092
        %v1094 = vsel %vm1081, %v1087, 0.0
        %v1095 = vsel %vm1081, %v1089, 0.0
        %v1096 = vsel %vm1081, %v1091, 0.0
        %v1097 = vsel %vm1081, %v1093, 0.0
        %v1098 = vld [vmem:[%s416] sm:$0xff]
        %v1099 = vld [vmem:[%s416 + $0x8] sm:$0xff]
        %v1100 = vld [vmem:[%s416 + $0x10] sm:$0xff]
        %v1101 = vld [vmem:[%s416 + $0x18] sm:$0xff]
        %v1102 = vmul.f32 %v1094, 0.5
        %v1103 = vmul.f32 %v1095, 0.5
        %v1104 = vmul.f32 %v1096, 0.5
        %v1105 = vmul.f32 %v1097, 0.5
        %v1106 = vmul.f32 %v1102, 1.442695
        %v1107 = vpow.pop %v1106
        %v1108 = vmul.f32 %v1103, 1.442695
        %v1109 = vpow.pop %v1108
        %v1110 = vmul.f32 %v1104, 1.442695
        %v1111 = vpow.pop %v1110
        %v1112 = vmul.f32 %v1105, 1.442695
        %v1113 = vpow.pop %v1112
        %v1114 = vmul.f32 %v1098, %v1107
        %v1115 = vmul.f32 %v1099, %v1109
        %v1116 = vmul.f32 %v1100, %v1111
        %v1117 = vmul.f32 %v1101, %v1113
        %v1118 = vadd.f32 %v1114, %v1082
        %v1119 = vadd.f32 %v1115, %v1083
        %v1120 = vadd.f32 %v1116, %v1084
        %v1121 = vadd.f32 %v1117, %v1085
        %v1122 = vtanh.pop %v1118
        %v1123 = vtanh.pop %v1119
        %v1124 = vtanh.pop %v1120
        %v1125 = vtanh.pop %v1121
        %vm1126 = vcmp.lt.s32.totalorder %v492, 16
        %v1127 = vsel %vm1126, %v1122, 0.0
        %v1128 = vsel %vm1126, %v1123, 0.0
        %v1129 = vsel %vm1126, %v1124, 0.0
        %v1130 = vsel %vm1126, %v1125, 0.0
        %v1131 = vpack.c.bf16 %v1128, %v1127
        %v1132 = vpack.c.bf16 %v1130, %v1129
        %v1133 = vld [vmem:[%s6] sm:$0x1]
        %v1134 = vmul.f32 %v498, %v1133
        %s1135 = scalar_lea.vmem [#allocation8], 384
        %v1136 = vld [vmem:[%s1135] sm:$0xf]
        %v1137 = vld [vmem:[%s1135 + $0x4] sm:$0xf]
        %v1138 = vld [vmem:[%s1135 + $0x8] sm:$0xf]
        %v1139 = vld [vmem:[%s1135 + $0xc] sm:$0xf]
        %v1140 = vld [vmem:[%s1135 + $0x10] sm:$0xf]
        %v1141 = vld [vmem:[%s1135 + $0x14] sm:$0xf]
        %v1142 = vld [vmem:[%s1135 + $0x18] sm:$0xf]
        %v1143 = vld [vmem:[%s1135 + $0x1c] sm:$0xf]
        %v1144 = vld [vmem:[%s1135 + $0x20] sm:$0xf]
        %v1145 = vld [vmem:[%s1135 + $0x24] sm:$0xf]
        %v1146 = vld [vmem:[%s1135 + $0x28] sm:$0xf]
        %v1147 = vld [vmem:[%s1135 + $0x2c] sm:$0xf]
        %v1148 = vld [vmem:[%s1135 + $0x30] sm:$0xf]
        %v1149 = vld [vmem:[%s1135 + $0x34] sm:$0xf]
        %v1150 = vld [vmem:[%s1135 + $0x38] sm:$0xf]
        %v1151 = vld [vmem:[%s1135 + $0x3c] sm:$0xf]
        %v1153 = vperm.slane %v1134, 0
        %v1171 = vunpack.c.l.b16 %v1136
        %v1172 = vunpack.c.l.b16 %v1137
        %v1173 = vunpack.c.l.b16 %v1138
        %v1174 = vunpack.c.l.b16 %v1139
        %v1175 = vunpack.c.l.b16 %v1140
        %v1176 = vunpack.c.l.b16 %v1141
        %v1177 = vunpack.c.l.b16 %v1142
        %v1178 = vunpack.c.l.b16 %v1143
        %v1179 = vunpack.c.l.b16 %v1144
        %v1180 = vunpack.c.l.b16 %v1145
        %v1181 = vunpack.c.l.b16 %v1146
        %v1182 = vunpack.c.l.b16 %v1147
        %v1183 = vunpack.c.l.b16 %v1148
        %v1184 = vunpack.c.l.b16 %v1149
        %v1185 = vunpack.c.l.b16 %v1150
        %v1186 = vunpack.c.l.b16 %v1151
        %v1187 = vpack.c.b16 %v1172, %v1171
        %v1188 = vpack.c.b16 %v1174, %v1173
        %v1189 = vpack.c.b16 %v1176, %v1175
        %v1190 = vpack.c.b16 %v1178, %v1177
        %v1191 = vpack.c.b16 %v1180, %v1179
        %v1192 = vpack.c.b16 %v1182, %v1181
        %v1193 = vpack.c.b16 %v1184, %v1183
        %v1194 = vpack.c.b16 %v1186, %v1185
        %1203 = vmatpush.bf16.msra.mxu0 %v1194
        %1204 = vmatpush.bf16.msra.mxu0 %v1193
        %1205 = vmatpush.bf16.msra.mxu0 %v1192
        %1206 = vmatpush.bf16.msra.mxu0 %v1191
        %1207 = vmatpush.bf16.msra.mxu0 %v1190
        %1208 = vmatpush.bf16.msra.mxu0 %v1189
        %1209 = vmatpush.bf16.msra.mxu0 %v1188
        %1210 = vmatpush.bf16.msra.mxu0 %v1187
        %1211 = vmatmul.bf16.gmra.mxu0 %v1131
        %v1212 = vpop.f32.mrf.mxu0
        %v1213 = vadd.f32 %v1153, %v1212
        %v1214 = vpop.f32.mrf.mxu0
        %v1215 = vadd.f32 %v1153, %v1214
        %1216 = vmatmul.bf16.gmra.mxu0 %v1132
        %v1217 = vpop.f32.mrf.mxu0
        %v1218 = vadd.f32 %v1153, %v1217
        %v1219 = vpop.f32.mrf.mxu0
        %v1220 = vadd.f32 %v1153, %v1219
        %1221 = vdwg.mxu0
        %s1222 = scalar_lea.vmem [#allocation9], 6
        %v1223 = vld [vmem:[%s1222] sm:$0x1]
        %v1225 = vperm.slane %v1223, 0
        %v1227 = vadd.f32 %v1213, %v1225
        %v1228 = vadd.f32 %v1215, %v1225
        %v1229 = vadd.f32 %v1218, %v1225
        %v1230 = vadd.f32 %v1220, %v1225
        %v1231 = vmax.f32 %v1227, 0.0
        %v1232 = vmax.f32 %v1228, 0.0
        %v1233 = vmax.f32 %v1229, 0.0
        %v1234 = vmax.f32 %v1230, 0.0
        %v1235 = vpack.c.bf16 %v1232, %v1231
        %v1236 = vpack.c.bf16 %v1234, %v1233
        %s1237 = scalar_lea.vmem [#allocation8], 448
        %v1238 = vld [vmem:[%s1237] sm:$0xf]
        %v1239 = vld [vmem:[%s1237 + $0x4] sm:$0xf]
        %v1240 = vld [vmem:[%s1237 + $0x8] sm:$0xf]
        %v1241 = vld [vmem:[%s1237 + $0xc] sm:$0xf]
        %v1242 = vld [vmem:[%s1237 + $0x10] sm:$0xf]
        %v1243 = vld [vmem:[%s1237 + $0x14] sm:$0xf]
        %v1244 = vld [vmem:[%s1237 + $0x18] sm:$0xf]
        %v1245 = vld [vmem:[%s1237 + $0x1c] sm:$0xf]
        %v1246 = vld [vmem:[%s1237 + $0x20] sm:$0xf]
        %v1247 = vld [vmem:[%s1237 + $0x24] sm:$0xf]
        %v1248 = vld [vmem:[%s1237 + $0x28] sm:$0xf]
        %v1249 = vld [vmem:[%s1237 + $0x2c] sm:$0xf]
        %v1250 = vld [vmem:[%s1237 + $0x30] sm:$0xf]
        %v1251 = vld [vmem:[%s1237 + $0x34] sm:$0xf]
        %v1252 = vld [vmem:[%s1237 + $0x38] sm:$0xf]
        %v1253 = vld [vmem:[%s1237 + $0x3c] sm:$0xf]
        %s1254 = scalar_lea.vmem [#allocation9], 7
        %v1255 = vld [vmem:[%s1254] sm:$0x1]
        %v1257 = vperm.slane %v1255, 0
        %v1275 = vunpack.c.l.b16 %v1238
        %v1276 = vunpack.c.l.b16 %v1239
        %v1277 = vunpack.c.l.b16 %v1240
        %v1278 = vunpack.c.l.b16 %v1241
        %v1279 = vunpack.c.l.b16 %v1242
        %v1280 = vunpack.c.l.b16 %v1243
        %v1281 = vunpack.c.l.b16 %v1244
        %v1282 = vunpack.c.l.b16 %v1245
        %v1283 = vunpack.c.l.b16 %v1246
        %v1284 = vunpack.c.l.b16 %v1247
        %v1285 = vunpack.c.l.b16 %v1248
        %v1286 = vunpack.c.l.b16 %v1249
        %v1287 = vunpack.c.l.b16 %v1250
        %v1288 = vunpack.c.l.b16 %v1251
        %v1289 = vunpack.c.l.b16 %v1252
        %v1290 = vunpack.c.l.b16 %v1253
        %v1291 = vpack.c.b16 %v1276, %v1275
        %v1292 = vpack.c.b16 %v1278, %v1277
        %v1293 = vpack.c.b16 %v1280, %v1279
        %v1294 = vpack.c.b16 %v1282, %v1281
        %v1295 = vpack.c.b16 %v1284, %v1283
        %v1296 = vpack.c.b16 %v1286, %v1285
        %v1297 = vpack.c.b16 %v1288, %v1287
        %v1298 = vpack.c.b16 %v1290, %v1289
        %1307 = vmatpush.bf16.msra.mxu0 %v1298
        %1308 = vmatpush.bf16.msra.mxu0 %v1297
        %1309 = vmatpush.bf16.msra.mxu0 %v1296
        %1310 = vmatpush.bf16.msra.mxu0 %v1295
        %1311 = vmatpush.bf16.msra.mxu0 %v1294
        %1312 = vmatpush.bf16.msra.mxu0 %v1293
        %1313 = vmatpush.bf16.msra.mxu0 %v1292
        %1314 = vmatpush.bf16.msra.mxu0 %v1291
        %1315 = vmatmul.bf16.gmra.mxu0 %v1235
        %v1316 = vpop.f32.mrf.mxu0
        %v1317 = vadd.f32 %v1257, %v1316
        %v1318 = vpop.f32.mrf.mxu0
        %v1319 = vadd.f32 %v1257, %v1318
        %1320 = vmatmul.bf16.gmra.mxu0 %v1236
        %v1321 = vpop.f32.mrf.mxu0
        %v1322 = vadd.f32 %v1257, %v1321
        %v1323 = vpop.f32.mrf.mxu0
        %v1324 = vadd.f32 %v1257, %v1323
        %1325 = vdwg.mxu0
        %v1326 = vmax.f32 %v1317, 0.0
        %v1327 = vmax.f32 %v1319, 0.0
        %v1328 = vmax.f32 %v1322, 0.0
        %v1329 = vmax.f32 %v1324, 0.0
        %v1330 = vpack.c.bf16 %v1327, %v1326
        %v1331 = vpack.c.bf16 %v1329, %v1328
        %s1332 = scalar_lea.vmem [#allocation8], 512
        %v1333 = vld [vmem:[%s1332] sm:$0xf]
        %v1334 = vld [vmem:[%s1332 + $0x4] sm:$0xf]
        %v1335 = vld [vmem:[%s1332 + $0x8] sm:$0xf]
        %v1336 = vld [vmem:[%s1332 + $0xc] sm:$0xf]
        %v1337 = vld [vmem:[%s1332 + $0x10] sm:$0xf]
        %v1338 = vld [vmem:[%s1332 + $0x14] sm:$0xf]
        %v1339 = vld [vmem:[%s1332 + $0x18] sm:$0xf]
        %v1340 = vld [vmem:[%s1332 + $0x1c] sm:$0xf]
        %v1341 = vld [vmem:[%s1332 + $0x20] sm:$0xf]
        %v1342 = vld [vmem:[%s1332 + $0x24] sm:$0xf]
        %v1343 = vld [vmem:[%s1332 + $0x28] sm:$0xf]
        %v1344 = vld [vmem:[%s1332 + $0x2c] sm:$0xf]
        %v1345 = vld [vmem:[%s1332 + $0x30] sm:$0xf]
        %v1346 = vld [vmem:[%s1332 + $0x34] sm:$0xf]
        %v1347 = vld [vmem:[%s1332 + $0x38] sm:$0xf]
        %v1348 = vld [vmem:[%s1332 + $0x3c] sm:$0xf]
        %s1349 = scalar_lea.vmem [#allocation9], 8
        %v1350 = vld [vmem:[%s1349] sm:$0x1]
        %v1352 = vperm.slane %v1350, 0
        %v1370 = vunpack.c.l.b16 %v1333
        %v1371 = vunpack.c.l.b16 %v1334
        %v1372 = vunpack.c.l.b16 %v1335
        %v1373 = vunpack.c.l.b16 %v1336
        %v1374 = vunpack.c.l.b16 %v1337
        %v1375 = vunpack.c.l.b16 %v1338
        %v1376 = vunpack.c.l.b16 %v1339
        %v1377 = vunpack.c.l.b16 %v1340
        %v1378 = vunpack.c.l.b16 %v1341
        %v1379 = vunpack.c.l.b16 %v1342
        %v1380 = vunpack.c.l.b16 %v1343
        %v1381 = vunpack.c.l.b16 %v1344
        %v1382 = vunpack.c.l.b16 %v1345
        %v1383 = vunpack.c.l.b16 %v1346
        %v1384 = vunpack.c.l.b16 %v1347
        %v1385 = vunpack.c.l.b16 %v1348
        %v1386 = vpack.c.b16 %v1371, %v1370
        %v1387 = vpack.c.b16 %v1373, %v1372
        %v1388 = vpack.c.b16 %v1375, %v1374
        %v1389 = vpack.c.b16 %v1377, %v1376
        %v1390 = vpack.c.b16 %v1379, %v1378
        %v1391 = vpack.c.b16 %v1381, %v1380
        %v1392 = vpack.c.b16 %v1383, %v1382
        %v1393 = vpack.c.b16 %v1385, %v1384
        %1402 = vmatpush.bf16.msra.mxu0 %v1393
        %1403 = vmatpush.bf16.msra.mxu0 %v1392
        %1404 = vmatpush.bf16.msra.mxu0 %v1391
        %1405 = vmatpush.bf16.msra.mxu0 %v1390
        %1406 = vmatpush.bf16.msra.mxu0 %v1389
        %1407 = vmatpush.bf16.msra.mxu0 %v1388
        %1408 = vmatpush.bf16.msra.mxu0 %v1387
        %1409 = vmatpush.bf16.msra.mxu0 %v1386
        %1410 = vmatmul.bf16.gmra.mxu0 %v1330
        %v1411 = vpop.f32.mrf.mxu0
        %v1412 = vadd.f32 %v1352, %v1411
        %v1413 = vpop.f32.mrf.mxu0
        %v1414 = vadd.f32 %v1352, %v1413
        %1415 = vmatmul.bf16.gmra.mxu0 %v1331
        %v1416 = vpop.f32.mrf.mxu0
        %v1417 = vadd.f32 %v1352, %v1416
        %v1418 = vpop.f32.mrf.mxu0
        %v1419 = vadd.f32 %v1352, %v1418
        %1420 = vdwg.mxu0
        %v1421 = vmax.f32 %v1412, 0.0
        %v1422 = vmax.f32 %v1414, 0.0
        %v1423 = vmax.f32 %v1417, 0.0
        %v1424 = vmax.f32 %v1419, 0.0
        %v1425 = vpack.c.bf16 %v1422, %v1421
        %v1426 = vpack.c.bf16 %v1424, %v1423
        %s1427 = scalar_lea.vmem [#allocation8], 576
        %v1428 = vld [vmem:[%s1427] sm:$0xf]
        %v1429 = vld [vmem:[%s1427 + $0x4] sm:$0xf]
        %v1430 = vld [vmem:[%s1427 + $0x8] sm:$0xf]
        %v1431 = vld [vmem:[%s1427 + $0xc] sm:$0xf]
        %v1432 = vld [vmem:[%s1427 + $0x10] sm:$0xf]
        %v1433 = vld [vmem:[%s1427 + $0x14] sm:$0xf]
        %v1434 = vld [vmem:[%s1427 + $0x18] sm:$0xf]
        %v1435 = vld [vmem:[%s1427 + $0x1c] sm:$0xf]
        %v1436 = vld [vmem:[%s1427 + $0x20] sm:$0xf]
        %v1437 = vld [vmem:[%s1427 + $0x24] sm:$0xf]
        %v1438 = vld [vmem:[%s1427 + $0x28] sm:$0xf]
        %v1439 = vld [vmem:[%s1427 + $0x2c] sm:$0xf]
        %v1440 = vld [vmem:[%s1427 + $0x30] sm:$0xf]
        %v1441 = vld [vmem:[%s1427 + $0x34] sm:$0xf]
        %v1442 = vld [vmem:[%s1427 + $0x38] sm:$0xf]
        %v1443 = vld [vmem:[%s1427 + $0x3c] sm:$0xf]
        %s1444 = scalar_lea.vmem [#allocation9], 9
        %v1445 = vld [vmem:[%s1444] sm:$0x1]
        %v1447 = vperm.slane %v1445, 0
        %v1465 = vunpack.c.l.b16 %v1428
        %v1466 = vunpack.c.l.b16 %v1429
        %v1467 = vunpack.c.l.b16 %v1430
        %v1468 = vunpack.c.l.b16 %v1431
        %v1469 = vunpack.c.l.b16 %v1432
        %v1470 = vunpack.c.l.b16 %v1433
        %v1471 = vunpack.c.l.b16 %v1434
        %v1472 = vunpack.c.l.b16 %v1435
        %v1473 = vunpack.c.l.b16 %v1436
        %v1474 = vunpack.c.l.b16 %v1437
        %v1475 = vunpack.c.l.b16 %v1438
        %v1476 = vunpack.c.l.b16 %v1439
        %v1477 = vunpack.c.l.b16 %v1440
        %v1478 = vunpack.c.l.b16 %v1441
        %v1479 = vunpack.c.l.b16 %v1442
        %v1480 = vunpack.c.l.b16 %v1443
        %v1481 = vpack.c.b16 %v1466, %v1465
        %v1482 = vpack.c.b16 %v1468, %v1467
        %v1483 = vpack.c.b16 %v1470, %v1469
        %v1484 = vpack.c.b16 %v1472, %v1471
        %v1485 = vpack.c.b16 %v1474, %v1473
        %v1486 = vpack.c.b16 %v1476, %v1475
        %v1487 = vpack.c.b16 %v1478, %v1477
        %v1488 = vpack.c.b16 %v1480, %v1479
        %1497 = vmatpush.bf16.msra.mxu0 %v1488
        %1498 = vmatpush.bf16.msra.mxu0 %v1487
        %1499 = vmatpush.bf16.msra.mxu0 %v1486
        %1500 = vmatpush.bf16.msra.mxu0 %v1485
        %1501 = vmatpush.bf16.msra.mxu0 %v1484
        %1502 = vmatpush.bf16.msra.mxu0 %v1483
        %1503 = vmatpush.bf16.msra.mxu0 %v1482
        %1504 = vmatpush.bf16.msra.mxu0 %v1481
        %1505 = vmatmul.bf16.gmra.mxu0 %v1425
        %v1506 = vpop.f32.mrf.mxu0
        %v1507 = vadd.f32 %v1447, %v1506
        %v1508 = vpop.f32.mrf.mxu0
        %v1509 = vadd.f32 %v1447, %v1508
        %1510 = vmatmul.bf16.gmra.mxu0 %v1426
        %v1511 = vpop.f32.mrf.mxu0
        %v1512 = vadd.f32 %v1447, %v1511
        %v1513 = vpop.f32.mrf.mxu0
        %v1514 = vadd.f32 %v1447, %v1513
        %1515 = vdwg.mxu0
        %v1516 = vmax.f32 %v1507, 0.0
        %v1517 = vmax.f32 %v1509, 0.0
        %v1518 = vmax.f32 %v1512, 0.0
        %v1519 = vmax.f32 %v1514, 0.0
        %v1520 = vpack.c.bf16 %v1517, %v1516
        %v1521 = vpack.c.bf16 %v1519, %v1518
        %s1522 = scalar_lea.vmem [#allocation8], 640
        %v1523 = vld [vmem:[%s1522] sm:$0xf]
        %v1524 = vld [vmem:[%s1522 + $0x4] sm:$0xf]
        %v1525 = vld [vmem:[%s1522 + $0x8] sm:$0xf]
        %v1526 = vld [vmem:[%s1522 + $0xc] sm:$0xf]
        %v1527 = vld [vmem:[%s1522 + $0x10] sm:$0xf]
        %v1528 = vld [vmem:[%s1522 + $0x14] sm:$0xf]
        %v1529 = vld [vmem:[%s1522 + $0x18] sm:$0xf]
        %v1530 = vld [vmem:[%s1522 + $0x1c] sm:$0xf]
        %v1531 = vld [vmem:[%s1522 + $0x20] sm:$0xf]
        %v1532 = vld [vmem:[%s1522 + $0x24] sm:$0xf]
        %v1533 = vld [vmem:[%s1522 + $0x28] sm:$0xf]
        %v1534 = vld [vmem:[%s1522 + $0x2c] sm:$0xf]
        %v1535 = vld [vmem:[%s1522 + $0x30] sm:$0xf]
        %v1536 = vld [vmem:[%s1522 + $0x34] sm:$0xf]
        %v1537 = vld [vmem:[%s1522 + $0x38] sm:$0xf]
        %v1538 = vld [vmem:[%s1522 + $0x3c] sm:$0xf]
        %s1539 = scalar_lea.vmem [#allocation9], 10
        %v1540 = vld [vmem:[%s1539] sm:$0x1]
        %v1542 = vperm.slane %v1540, 0
        %v1560 = vunpack.c.l.b16 %v1523
        %v1561 = vunpack.c.l.b16 %v1524
        %v1562 = vunpack.c.l.b16 %v1525
        %v1563 = vunpack.c.l.b16 %v1526
        %v1564 = vunpack.c.l.b16 %v1527
        %v1565 = vunpack.c.l.b16 %v1528
        %v1566 = vunpack.c.l.b16 %v1529
        %v1567 = vunpack.c.l.b16 %v1530
        %v1568 = vunpack.c.l.b16 %v1531
        %v1569 = vunpack.c.l.b16 %v1532
        %v1570 = vunpack.c.l.b16 %v1533
        %v1571 = vunpack.c.l.b16 %v1534
        %v1572 = vunpack.c.l.b16 %v1535
        %v1573 = vunpack.c.l.b16 %v1536
        %v1574 = vunpack.c.l.b16 %v1537
        %v1575 = vunpack.c.l.b16 %v1538
        %v1576 = vpack.c.b16 %v1561, %v1560
        %v1577 = vpack.c.b16 %v1563, %v1562
        %v1578 = vpack.c.b16 %v1565, %v1564
        %v1579 = vpack.c.b16 %v1567, %v1566
        %v1580 = vpack.c.b16 %v1569, %v1568
        %v1581 = vpack.c.b16 %v1571, %v1570
        %v1582 = vpack.c.b16 %v1573, %v1572
        %v1583 = vpack.c.b16 %v1575, %v1574
        %1592 = vmatpush.bf16.msra.mxu0 %v1583
        %1593 = vmatpush.bf16.msra.mxu0 %v1582
        %1594 = vmatpush.bf16.msra.mxu0 %v1581
        %1595 = vmatpush.bf16.msra.mxu0 %v1580
        %1596 = vmatpush.bf16.msra.mxu0 %v1579
        %1597 = vmatpush.bf16.msra.mxu0 %v1578
        %1598 = vmatpush.bf16.msra.mxu0 %v1577
        %1599 = vmatpush.bf16.msra.mxu0 %v1576
        %1600 = vmatmul.bf16.gmra.mxu0 %v1520
        %v1601 = vpop.f32.mrf.mxu0
        %v1602 = vadd.f32 %v1542, %v1601
        %v1603 = vpop.f32.mrf.mxu0
        %v1604 = vadd.f32 %v1542, %v1603
        %1605 = vmatmul.bf16.gmra.mxu0 %v1521
        %v1606 = vpop.f32.mrf.mxu0
        %v1607 = vadd.f32 %v1542, %v1606
        %v1608 = vpop.f32.mrf.mxu0
        %v1609 = vadd.f32 %v1542, %v1608
        %1610 = vdwg.mxu0
        %v1611 = vmax.f32 %v1602, 0.0
        %v1612 = vmax.f32 %v1604, 0.0
        %v1613 = vmax.f32 %v1607, 0.0
        %v1614 = vmax.f32 %v1609, 0.0
        %v1615 = vpack.c.bf16 %v1612, %v1611
        %v1616 = vpack.c.bf16 %v1614, %v1613
        %s1617 = scalar_lea.vmem [#allocation8], 704
        %v1618 = vld [vmem:[%s1617] sm:$0xf]
        %v1619 = vld [vmem:[%s1617 + $0x4] sm:$0xf]
        %v1620 = vld [vmem:[%s1617 + $0x8] sm:$0xf]
        %v1621 = vld [vmem:[%s1617 + $0xc] sm:$0xf]
        %v1622 = vld [vmem:[%s1617 + $0x10] sm:$0xf]
        %v1623 = vld [vmem:[%s1617 + $0x14] sm:$0xf]
        %v1624 = vld [vmem:[%s1617 + $0x18] sm:$0xf]
        %v1625 = vld [vmem:[%s1617 + $0x1c] sm:$0xf]
        %v1626 = vld [vmem:[%s1617 + $0x20] sm:$0xf]
        %v1627 = vld [vmem:[%s1617 + $0x24] sm:$0xf]
        %v1628 = vld [vmem:[%s1617 + $0x28] sm:$0xf]
        %v1629 = vld [vmem:[%s1617 + $0x2c] sm:$0xf]
        %v1630 = vld [vmem:[%s1617 + $0x30] sm:$0xf]
        %v1631 = vld [vmem:[%s1617 + $0x34] sm:$0xf]
        %v1632 = vld [vmem:[%s1617 + $0x38] sm:$0xf]
        %v1633 = vld [vmem:[%s1617 + $0x3c] sm:$0xf]
        %s1634 = scalar_lea.vmem [#allocation9], 11
        %v1635 = vld [vmem:[%s1634] sm:$0x1]
        %v1637 = vperm.slane %v1635, 0
        %v1655 = vunpack.c.l.b16 %v1618
        %v1656 = vunpack.c.l.b16 %v1619
        %v1657 = vunpack.c.l.b16 %v1620
        %v1658 = vunpack.c.l.b16 %v1621
        %v1659 = vunpack.c.l.b16 %v1622
        %v1660 = vunpack.c.l.b16 %v1623
        %v1661 = vunpack.c.l.b16 %v1624
        %v1662 = vunpack.c.l.b16 %v1625
        %v1663 = vunpack.c.l.b16 %v1626
        %v1664 = vunpack.c.l.b16 %v1627
        %v1665 = vunpack.c.l.b16 %v1628
        %v1666 = vunpack.c.l.b16 %v1629
        %v1667 = vunpack.c.l.b16 %v1630
        %v1668 = vunpack.c.l.b16 %v1631
        %v1669 = vunpack.c.l.b16 %v1632
        %v1670 = vunpack.c.l.b16 %v1633
        %v1671 = vpack.c.b16 %v1656, %v1655
        %v1672 = vpack.c.b16 %v1658, %v1657
        %v1673 = vpack.c.b16 %v1660, %v1659
        %v1674 = vpack.c.b16 %v1662, %v1661
        %v1675 = vpack.c.b16 %v1664, %v1663
        %v1676 = vpack.c.b16 %v1666, %v1665
        %v1677 = vpack.c.b16 %v1668, %v1667
        %v1678 = vpack.c.b16 %v1670, %v1669
        %1687 = vmatpush.bf16.msra.mxu0 %v1678
        %1688 = vmatpush.bf16.msra.mxu0 %v1677
        %1689 = vmatpush.bf16.msra.mxu0 %v1676
        %1690 = vmatpush.bf16.msra.mxu0 %v1675
        %1691 = vmatpush.bf16.msra.mxu0 %v1674
        %1692 = vmatpush.bf16.msra.mxu0 %v1673
        %1693 = vmatpush.bf16.msra.mxu0 %v1672
        %1694 = vmatpush.bf16.msra.mxu0 %v1671
        %1695 = vmatmul.bf16.gmra.mxu0 %v1615
        %v1696 = vpop.f32.mrf.mxu0
        %v1697 = vadd.f32 %v1637, %v1696
        %v1698 = vpop.f32.mrf.mxu0
        %v1699 = vadd.f32 %v1637, %v1698
        %1700 = vmatmul.bf16.gmra.mxu0 %v1616
        %v1701 = vpop.f32.mrf.mxu0
        %v1702 = vadd.f32 %v1637, %v1701
        %v1703 = vpop.f32.mrf.mxu0
        %v1704 = vadd.f32 %v1637, %v1703
        %1705 = vdwg.mxu0
        %v1706 = vxor.u32 %v1697, 2147483648
        %v1707 = vxor.u32 %v1699, 2147483648
        %v1708 = vxor.u32 %v1702, 2147483648
        %v1709 = vxor.u32 %v1704, 2147483648
        %v1710 = vmul.f32 %v1706, 1.442695
        %v1711 = vpow.pop %v1710
        %v1712 = vmul.f32 %v1707, 1.442695
        %v1713 = vpow.pop %v1712
        %v1714 = vmul.f32 %v1708, 1.442695
        %v1715 = vpow.pop %v1714
        %v1716 = vmul.f32 %v1709, 1.442695
        %v1717 = vpow.pop %v1716
        %v1718 = vadd.f32 %v1711, 1.0
        %v1719 = vadd.f32 %v1713, 1.0
        %v1720 = vadd.f32 %v1715, 1.0
        %v1721 = vadd.f32 %v1717, 1.0
        %v1722 = vrcp.pop %v1718
        %v1723 = vmul.f32 %v1718, %v1722
        %v1724 = vsub.f32 1.0, %v1723
        %v1725 = vmul.f32 %v1722, %v1724
        %v1726 = vadd.f32 %v1722, %v1725
        %vm1727 = vweird.f32 %v1718
        %vm1728 = vweird.f32 %v1722
        %vm1729 = vmor %vm1727, %vm1728
        %v1730 = vsel %vm1729, %v1722, %v1726
        %v1731 = vand.u32 2147483647, %v1718
        %vm1732 = vcmp.eq.f32.partialorder %v1731, 8.507059e+37
        %v1733 = vand.u32 %v1718, 2147483648
        %v1734 = vor.u32 1.1754944e-38, %v1733
        %v1735 = vsel %vm1732, %v1734, %v1730
        %v1736 = vmul.f32 1.0, %v1735
        %v1737 = vrcp.pop %v1719
        %v1738 = vmul.f32 %v1719, %v1737
        %v1739 = vsub.f32 1.0, %v1738
        %v1740 = vmul.f32 %v1737, %v1739
        %v1741 = vadd.f32 %v1737, %v1740
        %vm1742 = vweird.f32 %v1719
        %vm1743 = vweird.f32 %v1737
        %vm1744 = vmor %vm1742, %vm1743
        %v1745 = vsel %vm1744, %v1737, %v1741
        %v1746 = vand.u32 2147483647, %v1719
        %vm1747 = vcmp.eq.f32.partialorder %v1746, 8.507059e+37
        %v1748 = vand.u32 %v1719, 2147483648
        %v1749 = vor.u32 1.1754944e-38, %v1748
        %v1750 = vsel %vm1747, %v1749, %v1745
        %v1751 = vmul.f32 1.0, %v1750
        %v1752 = vrcp.pop %v1720
        %v1753 = vmul.f32 %v1720, %v1752
        %v1754 = vsub.f32 1.0, %v1753
        %v1755 = vmul.f32 %v1752, %v1754
        %v1756 = vadd.f32 %v1752, %v1755
        %vm1757 = vweird.f32 %v1720
        %vm1758 = vweird.f32 %v1752
        %vm1759 = vmor %vm1757, %vm1758
        %v1760 = vsel %vm1759, %v1752, %v1756
        %v1761 = vand.u32 2147483647, %v1720
        %vm1762 = vcmp.eq.f32.partialorder %v1761, 8.507059e+37
        %v1763 = vand.u32 %v1720, 2147483648
        %v1764 = vor.u32 1.1754944e-38, %v1763
        %v1765 = vsel %vm1762, %v1764, %v1760
        %v1766 = vmul.f32 1.0, %v1765
        %v1767 = vrcp.pop %v1721
        %v1768 = vmul.f32 %v1721, %v1767
        %v1769 = vsub.f32 1.0, %v1768
        %v1770 = vmul.f32 %v1767, %v1769
        %v1771 = vadd.f32 %v1767, %v1770
        %vm1772 = vweird.f32 %v1721
        %vm1773 = vweird.f32 %v1767
        %vm1774 = vmor %vm1772, %vm1773
        %v1775 = vsel %vm1774, %v1767, %v1771
        %v1776 = vand.u32 2147483647, %v1721
        %vm1777 = vcmp.eq.f32.partialorder %v1776, 8.507059e+37
        %v1778 = vand.u32 %v1721, 2147483648
        %v1779 = vor.u32 1.1754944e-38, %v1778
        %v1780 = vsel %vm1777, %v1779, %v1775
        %v1781 = vmul.f32 1.0, %v1780
        %1782 = vst [vmem:[%s462] sm:$0xff] %v1736
        %1783 = vst [vmem:[%s462 + $0x8] sm:$0xff] %v1751
        %1784 = vst [vmem:[%s462 + $0x10] sm:$0xff] %v1766
        %1785 = vst [vmem:[%s462 + $0x18] sm:$0xff] %v1781
        %1786 = vst [vmem:[%s469] sm:$0xff] %v1127
        %1787 = vst [vmem:[%s469 + $0x8] sm:$0xff] %v1128
        %1788 = vst [vmem:[%s469 + $0x10] sm:$0xff] %v1129
        %1789 = vst [vmem:[%s469 + $0x18] sm:$0xff] %v1130
        %1790 = vst [vmem:[%s476] sm:$0xff] %v1082
        %1791 = vst [vmem:[%s476 + $0x8] sm:$0xff] %v1083
        %1792 = vst [vmem:[%s476 + $0x10] sm:$0xff] %v1084
        %1793 = vst [vmem:[%s476 + $0x18] sm:$0xff] %v1085
        %1794 = vst [vmem:[%s483] sm:$0xff] %v1094
        %1795 = vst [vmem:[%s483 + $0x8] sm:$0xff] %v1095
        %1796 = vst [vmem:[%s483 + $0x10] sm:$0xff] %v1096
        %1797 = vst [vmem:[%s483 + $0x18] sm:$0xff] %v1097
        %s1798 = sand.u32 %s204, 1
        %s1799 = scalar_lea.sflag [#allocation5], %s1798
        %s1800 = sand.u32 %s204, 1
        %s1801 = smul.addr %s1800, 32
        %s1802 = scalar_lea.vmem [#allocation11], %s1801
        %s1803 = sand.u32 %s39, 1
        %s1804 = scalar_lea.sflag [#allocation13], %s1803
        %s1805 = sand.u32 %s230, 1
        %s1806 = smul.addr %s1805, 32
        %s1807 = scalar_lea.vmem [#allocation12], %s1806
        %s1808 = sand.u32 %s39, 1
        %s1809 = scalar_lea.sflag [#allocation13], %s1808
        %s1810 = sand.u32 %s256, 1
        %s1811 = smul.addr %s1810, 32
        %s1812 = scalar_lea.vmem [#allocation14], %s1811
        %s1813 = sand.u32 %s282, 1
        %s1814 = scalar_lea.sflag [#allocation16], %s1813
        %s1815 = sand.u32 %s282, 1
        %s1816 = smul.addr %s1815, 32
        %s1817 = scalar_lea.vmem [#allocation15], %s1816
        // Predicated region
        $region65: #{tpu_custom_call.1} parent=47 // pred_check
          %p1818 = pneg %p214
        $region66: #{tpu_custom_call.1} parent=47 // pred_check_branch
          %1820 = sbr.rel (%p1818) target = $region68
        $region67: #{tpu_custom_call.1} parent=47 // pred_region
          %s1821 = smul.u32 4, %s39
          %1823 = vsyncadd %s1799, 0
          %s1824 = smul.addr %s1821, 8
          %s1825 = scalar_lea.hbm %s7, %s1824
          %s1826 = sshll.u32 %s1802, 4
          %s1827 = int_to_ptr.vmem [resolvable:$true] %s1826
          %s1828 = sshll.u32 %s1825, 4
          %s1829 = int_to_ptr.hbm [resolvable:$true] %s1828
          %1834 = dma.vmem_to_hbm [thread:$0]  %s1827, 512, %s1829, %s1799, 128, 128, 8
        $region68: #{tpu_custom_call.1} parent=47 // pred_fallthru
          _
        // Predicated region
        $region69: #{tpu_custom_call.1} parent=47 // pred_check
          %p1835 = pneg %p240
        $region70: #{tpu_custom_call.1} parent=47 // pred_check_branch
          %1837 = sbr.rel (%p1835) target = $region72
        $region71: #{tpu_custom_call.1} parent=47 // pred_region
          %s1838 = smul.u32 4, %s39
          %1840 = vsyncadd %s1804, 0
          %s1841 = smul.addr %s1838, 8
          %s1842 = scalar_lea.hbm %s8, %s1841
          %s1843 = sshll.u32 %s1807, 4
          %s1844 = int_to_ptr.vmem [resolvable:$true] %s1843
          %s1845 = sshll.u32 %s1842, 4
          %s1846 = int_to_ptr.hbm [resolvable:$true] %s1845
          %1851 = dma.vmem_to_hbm [thread:$0]  %s1844, 512, %s1846, %s1804, 128, 128, 8
        $region72: #{tpu_custom_call.1} parent=47 // pred_fallthru
          _
        // Predicated region
        $region73: #{tpu_custom_call.1} parent=47 // pred_check
          %p1852 = pneg %p266
        $region74: #{tpu_custom_call.1} parent=47 // pred_check_branch
          %1854 = sbr.rel (%p1852) target = $region76
        $region75: #{tpu_custom_call.1} parent=47 // pred_region
          %s1855 = smul.u32 4, %s39
          %1857 = vsyncadd %s1809, 0
          %s1858 = smul.addr %s1855, 8
          %s1859 = scalar_lea.hbm %s9, %s1858
          %s1860 = sshll.u32 %s1812, 4
          %s1861 = int_to_ptr.vmem [resolvable:$true] %s1860
          %s1862 = sshll.u32 %s1859, 4
          %s1863 = int_to_ptr.hbm [resolvable:$true] %s1862
          %1868 = dma.vmem_to_hbm [thread:$0]  %s1861, 512, %s1863, %s1809, 128, 128, 8
        $region76: #{tpu_custom_call.1} parent=47 // pred_fallthru
          _
        // Predicated region
        $region77: #{tpu_custom_call.1} parent=47 // pred_check
          %p1869 = pneg %p292
        $region78: #{tpu_custom_call.1} parent=47 // pred_check_branch
          %1871 = sbr.rel (%p1869) target = $region80
        $region79: #{tpu_custom_call.1} parent=47 // pred_region
          %s1872 = smul.u32 4, %s39
          %1874 = vsyncadd %s1814, 0
          %s1875 = smul.addr %s1872, 8
          %s1876 = scalar_lea.hbm %s10, %s1875
          %s1877 = sshll.u32 %s1817, 4
          %s1878 = int_to_ptr.vmem [resolvable:$true] %s1877
          %s1879 = sshll.u32 %s1876, 4
          %s1880 = int_to_ptr.hbm [resolvable:$true] %s1879
          %1885 = dma.vmem_to_hbm [thread:$0]  %s1878, 512, %s1880, %s1814, 128, 128, 8
        $region80: #{tpu_custom_call.1} parent=47 // pred_fallthru
          _
      $region48: #{tpu_custom_call.1} parent=5 // pred_fallthru
        _
      %p1886 = scmp.le.s32.totalorder 2, %s34
      // Predicated region
      $region81: #{tpu_custom_call.1} parent=5 // pred_check
        %p1887 = pneg %p1886
      $region82: #{tpu_custom_call.1} parent=5 // pred_check_branch
        %1889 = sbr.rel (%p1887) target = $region84
      $region83: #{tpu_custom_call.1} parent=5 // pred_region
        %s1890 = ssub.s32 %s34, 2
        // Predicated region
        $region85: #{tpu_custom_call.1} parent=83 // pred_check
          %p1891 = pneg %p220
        $region86: #{tpu_custom_call.1} parent=83 // pred_check_branch
          %1893 = sbr.rel (%p1891) target = $region88
        $region87: #{tpu_custom_call.1} parent=83 // pred_region
          %s1894 = sand.u32 %s205, 1
          %s1895 = scalar_lea.sflag [#allocation5], %s1894
          %s1896 = sand.u32 %s205, 1
          %s1897 = smul.addr %s1896, 32
          %s1898 = scalar_lea.vmem [#allocation11], %s1897
          %1900 = dma.done %s1895, 512
        $region88: #{tpu_custom_call.1} parent=83 // pred_fallthru
          _
        // Predicated region
        $region89: #{tpu_custom_call.1} parent=83 // pred_check
          %p1901 = pneg %p246
        $region90: #{tpu_custom_call.1} parent=83 // pred_check_branch
          %1903 = sbr.rel (%p1901) target = $region92
        $region91: #{tpu_custom_call.1} parent=83 // pred_region
          %s1904 = sand.u32 %s40, 1
          %s1905 = scalar_lea.sflag [#allocation13], %s1904
          %s1906 = sand.u32 %s231, 1
          %s1907 = smul.addr %s1906, 32
          %s1908 = scalar_lea.vmem [#allocation12], %s1907
          %1910 = dma.done %s1905, 512
        $region92: #{tpu_custom_call.1} parent=83 // pred_fallthru
          _
        // Predicated region
        $region93: #{tpu_custom_call.1} parent=83 // pred_check
          %p1911 = pneg %p272
        $region94: #{tpu_custom_call.1} parent=83 // pred_check_branch
          %1913 = sbr.rel (%p1911) target = $region96
        $region95: #{tpu_custom_call.1} parent=83 // pred_region
          %s1914 = sand.u32 %s40, 1
          %s1915 = scalar_lea.sflag [#allocation13], %s1914
          %s1916 = sand.u32 %s257, 1
          %s1917 = smul.addr %s1916, 32
          %s1918 = scalar_lea.vmem [#allocation14], %s1917
          %1920 = dma.done %s1915, 512
        $region96: #{tpu_custom_call.1} parent=83 // pred_fallthru
          _
        // Predicated region
        $region97: #{tpu_custom_call.1} parent=83 // pred_check
          %p1921 = pneg %p298
        $region98: #{tpu_custom_call.1} parent=83 // pred_check_branch
          %1923 = sbr.rel (%p1921) target = $region100
        $region99: #{tpu_custom_call.1} parent=83 // pred_region
          %s1924 = sand.u32 %s283, 1
          %s1925 = scalar_lea.sflag [#allocation16], %s1924
          %s1926 = sand.u32 %s283, 1
          %s1927 = smul.addr %s1926, 32
          %s1928 = scalar_lea.vmem [#allocation15], %s1927
          %1930 = dma.done %s1925, 512
        $region100: #{tpu_custom_call.1} parent=83 // pred_fallthru
          _
      $region84: #{tpu_custom_call.1} parent=5 // pred_fallthru
        _
    $region6: #{tpu_custom_call.1} parent=1 // loop_footer
      %s38 = sadd.s32 1, %s34
    $region7: #{tpu_custom_call.1} parent=1 // loop_footer_branch
      %33 = sbr.rel target = $region3
    $region8: #{tpu_custom_call.1} parent=1 // loop_exit
      _
    %1931 = vsyncpa [#allocation4], 1
    %s1932 = scalar_lea.sflag [#allocation4], 1
    %1933 = vsyncpa %s1932, 1
    %1934 = vsyncpa [#allocation7], 1
    %s1935 = scalar_lea.sflag [#allocation7], 1
    %1936 = vsyncpa %s1935, 1
    %1937 = vsyncpa [#allocation10], 1
    %1938 = vsyncpa [#allocation5], 1
    %s1939 = scalar_lea.sflag [#allocation5], 1
    %1940 = vsyncpa %s1939, 1
    %1941 = vsyncpa [#allocation13], 1
    %s1942 = scalar_lea.sflag [#allocation13], 1
    %1943 = vsyncpa %s1942, 1
    %1944 = vsyncpa [#allocation16], 1
    %s1945 = scalar_lea.sflag [#allocation16], 1
    %1946 = vsyncpa %s1945, 1

</llo_original>
